<compile_context>
chip_gen: v6e
topology: v6e:2x2x1
jax: 0.10.0
libtpu: 0.0.40
codegen_flags: <defaults>
</compile_context>

<pallas_src>
import functools

import jax
import jax.numpy as jnp
from jax.experimental import pallas as pl
from jax.experimental.pallas import tpu as pltpu


# ---------------------------------------------------------------------------
# Fused kernel: LeakyReLU -> Conv2d(k4,s2,p1) -> ReLU -> ConvTranspose2d(k4,s2,p1)
#               (+ per-batch BN partial statistics), one grid step per batch image.
# ---------------------------------------------------------------------------
def _unet_inner_kernel(xph_ref, wd_ref, wu_ref, u_ref, st_ref, y_scr,
                       *, ho, wo, cin, ni, nf, neg_slope):
    # xph_ref: (1, ho+1, wo+1, 4*cin) f32   2x2 space-to-depth of the zero-padded input image
    # wd_ref:  (16*cin, ni)           bf16  packed-K Conv2d weight
    # wu_ref:  (4, 4*ni, nf)          bf16  per-output-phase packed-K ConvTranspose2d weight
    # u_ref:   (1, ho, wo, 4*nf)      bf16  pre-BN up output, 4 output phases folded into lanes
    # st_ref:  (1, 2, nf)             f32   per-batch (sum, sumsq) BN partial statistics
    # y_scr:   (ho+2, wo+2, ni)       bf16  VMEM-resident, zero-padded post-ReLU down activation

    # ---- down path: LeakyReLU (once, f32, v5e-safe) + Conv2d as ONE packed-K MXU matmul ----
    xt = xph_ref[0]                                         # (ho+1, wo+1, 4*cin) f32
    xt = jnp.where(xt >= 0, xt, xt * neg_slope).astype(jnp.bfloat16)
    down_slab = jnp.concatenate(
        [xt[a:a + ho, b:b + wo, :].reshape(ho * wo, 4 * cin)
         for a in (0, 1) for b in (0, 1)],
        axis=-1)                                            # (ho*wo, 16*cin) bf16
    y = jnp.dot(down_slab, wd_ref[...],
                preferred_element_type=jnp.float32)         # (ho*wo, ni) f32
    y = jnp.maximum(y, 0.0)                                 # ReLU (up-path prologue)

    # y stays in VMEM (never written to HBM); zero halo ring for the transposed conv.
    y_scr[...] = jnp.zeros(y_scr.shape, y_scr.dtype)
    y_scr[1:1 + ho, 1:1 + wo, :] = y.reshape(ho, wo, ni).astype(y_scr.dtype)

    # ---- up path: phase-decomposed ConvTranspose2d, one packed-K matmul per output phase ----
    # out[2P+r, 2Q+s, o] = sum_{a,b,c} ypad[P+r+a, Q+s+b, c] * Wt[c, o, 3-r-2a, 3-s-2b]
    phase_out = []
    s1 = jnp.zeros((1, nf), jnp.float32)
    s2 = jnp.zeros((1, nf), jnp.float32)
    for r in (0, 1):
        for s in (0, 1):
            up_slab = jnp.concatenate(
                [y_scr[r + a:r + a + ho, s + b:s + b + wo, :].reshape(ho * wo, ni)
                 for a in (0, 1) for b in (0, 1)],
                axis=-1)                                    # (ho*wo, 4*ni) bf16 (1 live slab)
            acc = jnp.dot(up_slab, wu_ref[2 * r + s],
                          preferred_element_type=jnp.float32)   # (ho*wo, nf) f32
            s1 = s1 + jnp.sum(acc, axis=0, keepdims=True)
            s2 = s2 + jnp.sum(acc * acc, axis=0, keepdims=True)
            phase_out.append(acc.reshape(ho, wo, nf).astype(u_ref.dtype))

    # Single lane-dense store of all 4 phases (last dim = 4*nf), and one store of the stats.
    u_ref[0] = jnp.concatenate(phase_out, axis=-1)          # (ho, wo, 4*nf) bf16
    st_ref[0] = jnp.concatenate([s1, s2], axis=0)           # (2, nf) f32


# ---------------------------------------------------------------------------
# Wrapper: forward of UnetBlock(nf, ni, innermost=True)  --  NCHW in, NCHW out.
# ---------------------------------------------------------------------------
def unet_block_innermost(x_nchw, params, *, eps=1e-5):
    n, cin, h, w = x_nchw.shape
    assert h % 2 == 0 and w % 2 == 0, "UnetBlock needs even spatial dims"
    ni = params["w_down"].shape[0]
    nf = params["w_up"].shape[1]
    ho, wo = h // 2, w // 2
    xf = x_nchw.astype(jnp.float32)

    # ---- input pre-pass: NCHW -> padded NHWC -> 2x2 space-to-depth (fusable XLA copy chain) ----
    # TODO(synk): if HLO shows this chain un-fused, move the phase split in-kernel (strided pl.ds
    #             reads from a single padded NHWC input) to avoid the extra HBM pass over x.
    x_nhwc = jnp.transpose(xf, (0, 2, 3, 1))
    x_pad = jnp.pad(x_nhwc, ((0, 0), (1, 1), (1, 1), (0, 0)))
    xph = (x_pad.reshape(n, ho + 1, 2, wo + 1, 2, cin)
           .transpose(0, 1, 3, 2, 4, 5)
           .reshape(n, ho + 1, wo + 1, 4 * cin))

    # Conv2d weight (ni, cin, 4, 4) -> packed-K (16*cin, ni), bf16 for the MXU.
    wd = (params["w_down"].astype(jnp.float32)
          .reshape(ni, cin, 2, 2, 2, 2)          # (o, c, a, ph, b, pw); kh=2a+ph, kw=2b+pw
          .transpose(2, 4, 3, 5, 1, 0)           # (a, b, ph, pw, c, o)
          .reshape(16 * cin, ni)
          .astype(jnp.bfloat16))

    # ConvTranspose2d weight (ni, nf, 4, 4) -> per-output-phase packed-K (4, 4*ni, nf), bf16.
    wu = (params["w_up"].astype(jnp.float32)[:, :, ::-1, ::-1]   # spatial flip
          .reshape(ni, nf, 2, 2, 2, 2)           # (c, o, a, r, b, s); flipped kh = 2a+r
          .transpose(3, 5, 2, 4, 0, 1)           # (r, s, a, b, c, o)
          .reshape(4, 4 * ni, nf)
          .astype(jnp.bfloat16))

    # TODO(synk): if n == 1, add a second parallel grid axis (e.g. nf output-channel tiles) so
    #             both v7x TensorCores get work; weights could also be single-buffered
    #             (pl.Buffered(1)) to free VMEM at 512-channel configs.
    u_pre, stats = pl.pallas_call(
        functools.partial(_unet_inner_kernel, ho=ho, wo=wo, cin=cin, ni=ni, nf=nf,
                          neg_slope=0.2),
        out_shape=(jax.ShapeDtypeStruct((n, ho, wo, 4 * nf), jnp.bfloat16),
                   jax.ShapeDtypeStruct((n, 2, nf), jnp.float32)),
        grid=(n,),
        in_specs=[pl.BlockSpec((1, ho + 1, wo + 1, 4 * cin), lambda i: (i, 0, 0, 0)),
                  pl.BlockSpec((16 * cin, ni), lambda i: (0, 0)),
                  pl.BlockSpec((4, 4 * ni, nf), lambda i: (0, 0, 0))],
        out_specs=(pl.BlockSpec((1, ho, wo, 4 * nf), lambda i: (i, 0, 0, 0)),
                   pl.BlockSpec((1, 2, nf), lambda i: (i, 0, 0))),
        scratch_shapes=[pltpu.VMEM((ho + 2, wo + 2, ni), jnp.bfloat16)],
        compiler_params=pltpu.CompilerParams(
            dimension_semantics=("parallel",),
            vmem_limit_bytes=40 * 1024 * 1024),
    )(xph, wd, wu)

    # ---- BatchNorm2d (training-mode batch stats) + de-phase + skip concat (XLA epilogue) ----
    m_count = float(n * h * w)
    sums = jnp.sum(stats, axis=0)                           # (2, nf) f32
    mean = sums[0] / m_count
    var = jnp.maximum(sums[1] / m_count - mean * mean, 0.0)  # biased var, as in PyTorch training BN
    scale = params["bn_gamma"].astype(jnp.float32) * jax.lax.rsqrt(var + eps)
    shift = params["bn_beta"].astype(jnp.float32) - mean * scale

    # De-phase + BN affine, emitting the up path directly in NCHW so the skip concat reuses the
    # original NCHW x with no extra transpose of x.
    u = u_pre.astype(jnp.float32).reshape(n, ho, wo, 2, 2, nf) * scale + shift
    u_nchw = jnp.transpose(u, (0, 5, 1, 3, 2, 4)).reshape(n, nf, h, w)
    # TODO(synk): running_mean / running_var (momentum) buffer updates are not modeled.
    # TODO(synk): if HLO shows the affine+transpose+concat epilogue un-fused, replace it with a
    #             second small Pallas pass writing the u half of a preallocated (n, cin+nf, h, w)
    #             buffer via input_output_aliases.
    return jnp.concatenate([xf, u_nchw], axis=1)            # cat([x, model(x)], dim=1)


# ---------------------------------------------------------------------------
if __name__ == "__main__":
    key = jax.random.PRNGKey(0)
    nf, ni = 4, 8              # UnetBlock(nf=4, ni=8, innermost=True); input_c defaults to nf
    n, h, w = 2, 16, 16
    k1, k2, k3 = jax.random.split(key, 3)

    params = {
        # Conv2d(input_c=nf -> ni, k=4): weight (ni, nf, 4, 4)
        "w_down": 0.05 * jax.random.normal(k1, (ni, nf, 4, 4), jnp.float32),
        # ConvTranspose2d(ni -> nf, k=4): weight (ni, nf, 4, 4)
        "w_up": 0.05 * jax.random.normal(k2, (ni, nf, 4, 4), jnp.float32),
        # BatchNorm2d(nf) affine params (PyTorch default init)
        "bn_gamma": jnp.ones((nf,), jnp.float32),
        "bn_beta": jnp.zeros((nf,), jnp.float32),
    }

    x = jax.random.normal(k3, (n, nf, h, w), jnp.float32)

    out = jax.jit(unet_block_innermost)(x, params)
    out = jax.block_until_ready(out)
    assert out.shape == (n, 2 * nf, h, w), out.shape
    print("KERNEL_OK")
</pallas_src>

<mosaic_0001>
module attributes {stable_mosaic.version = 11 : i64} {
  func.func @_unet_inner_kernel(%arg0: i32, %arg1: memref<1x9x9x16xf32, #tpu.memory_space<vmem>>, %arg2: memref<64x8xbf16, #tpu.memory_space<vmem>>, %arg3: memref<4x32x4xbf16, #tpu.memory_space<vmem>>, %arg4: memref<1x8x8x16xbf16, #tpu.memory_space<vmem>>, %arg5: memref<1x2x4xf32, #tpu.memory_space<vmem>>, %arg6: memref<10x10x8xbf16, #tpu.memory_space<vmem>>) attributes {dimension_semantics = [#tpu.dimension_semantics<parallel>], iteration_bounds = array<i64: 2>, scalar_prefetch = 0 : i64, scratch_operands = 1 : i64, tpu.core_type = #tpu.core_type<tc>, window_params = [{transform_indices = @transform_0, window_bounds = array<i64: 1, 9, 9, 16>}, {pipeline_mode = #tpu.pipeline_mode<synchronous>, transform_indices = @transform_1, window_bounds = array<i64: 64, 8>}, {pipeline_mode = #tpu.pipeline_mode<synchronous>, transform_indices = @transform_2, window_bounds = array<i64: 4, 32, 4>}, {transform_indices = @transform_3, window_bounds = array<i64: 1, 8, 8, 16>}, {transform_indices = @transform_4, window_bounds = array<i64: 1, 2, 4>}]} {
    %c0 = arith.constant 0 : index
    %c0_0 = arith.constant 0 : index
    %c0_1 = arith.constant 0 : index
    %c0_2 = arith.constant 0 : index
    %0 = vector.load %arg1[%c0, %c0_0, %c0_1, %c0_2] : memref<1x9x9x16xf32, #tpu.memory_space<vmem>>, vector<1x9x9x16xf32>
    %1 = vector.shape_cast %0 : vector<1x9x9x16xf32> to vector<9x9x16xf32>
    %cst = arith.constant 0.000000e+00 : f32
    %2 = vector.broadcast %cst : f32 to vector<9x9x16xf32>
    %3 = arith.cmpf oge, %1, %2 : vector<9x9x16xf32>
    %cst_3 = arith.constant 2.000000e-01 : f32
    %4 = vector.broadcast %cst_3 : f32 to vector<9x9x16xf32>
    %5 = arith.mulf %1, %4 : vector<9x9x16xf32>
    %6 = arith.select %3, %1, %5 : vector<9x9x16xi1>, vector<9x9x16xf32>
    %7 = arith.truncf %6 : vector<9x9x16xf32> to vector<9x9x16xbf16>
    %8 = vector.extract_strided_slice %7 {offsets = [0, 0, 0], sizes = [8, 8, 16], strides = [1, 1, 1]} : vector<9x9x16xbf16> to vector<8x8x16xbf16>
    %9 = vector.shape_cast %8 : vector<8x8x16xbf16> to vector<64x16xbf16>
    %10 = vector.extract_strided_slice %7 {offsets = [0, 1, 0], sizes = [8, 8, 16], strides = [1, 1, 1]} : vector<9x9x16xbf16> to vector<8x8x16xbf16>
    %11 = vector.shape_cast %10 : vector<8x8x16xbf16> to vector<64x16xbf16>
    %12 = vector.extract_strided_slice %7 {offsets = [1, 0, 0], sizes = [8, 8, 16], strides = [1, 1, 1]} : vector<9x9x16xbf16> to vector<8x8x16xbf16>
    %13 = vector.shape_cast %12 : vector<8x8x16xbf16> to vector<64x16xbf16>
    %14 = vector.extract_strided_slice %7 {offsets = [1, 1, 0], sizes = [8, 8, 16], strides = [1, 1, 1]} : vector<9x9x16xbf16> to vector<8x8x16xbf16>
    %15 = vector.shape_cast %14 : vector<8x8x16xbf16> to vector<64x16xbf16>
    %16 = tpu.concatenate %9, %11, %13, %15 in 1 : vector<64x16xbf16>, vector<64x16xbf16>, vector<64x16xbf16>, vector<64x16xbf16> -> vector<64x64xbf16>
    %c0_4 = arith.constant 0 : index
    %c0_5 = arith.constant 0 : index
    %17 = vector.load %arg2[%c0_4, %c0_5] : memref<64x8xbf16, #tpu.memory_space<vmem>>, vector<64x8xbf16>
    %cst_6 = arith.constant dense<0.000000e+00> : vector<64x8xf32>
    %18 = tpu.matmul %16, %17, %cst_6 {dimension_numbers = #tpu.dot_dimension_numbers<[1], [0], [0], [1], [0, 0, 1, 1], [], []>} : vector<64x64xbf16>, vector<64x8xbf16>, vector<64x8xf32> -> vector<64x8xf32>
    %cst_7 = arith.constant 0.000000e+00 : f32
    %19 = vector.broadcast %cst_7 : f32 to vector<64x8xf32>
    %20 = arith.maximumf %18, %19 : vector<64x8xf32>
    %cst_8 = arith.constant 0.000000e+00 : bf16
    %21 = vector.broadcast %cst_8 : bf16 to vector<10x10x8xbf16>
    %c0_9 = arith.constant 0 : index
    %c0_10 = arith.constant 0 : index
    %c0_11 = arith.constant 0 : index
    %22 = vector.load %arg6[%c0_9, %c0_10, %c0_11] : memref<10x10x8xbf16, #tpu.memory_space<vmem>>, vector<10x10x8xbf16>
    tpu.vector_store %arg6[%c0_9, %c0_10, %c0_11], %21 {strides = array<i32>} : memref<10x10x8xbf16, #tpu.memory_space<vmem>>, vector<10x10x8xbf16>,
    %23 = vector.shape_cast %20 : vector<64x8xf32> to vector<8x8x8xf32>
    %24 = arith.truncf %23 : vector<8x8x8xf32> to vector<8x8x8xbf16>
    %c1 = arith.constant 1 : index
    %c1_12 = arith.constant 1 : index
    %c0_13 = arith.constant 0 : index
    %25 = vector.load %arg6[%c1, %c1_12, %c0_13] : memref<10x10x8xbf16, #tpu.memory_space<vmem>>, vector<8x8x8xbf16>
    tpu.vector_store %arg6[%c1, %c1_12, %c0_13], %24 {strides = array<i32>} : memref<10x10x8xbf16, #tpu.memory_space<vmem>>, vector<8x8x8xbf16>,
    %cst_14 = arith.constant 0.000000e+00 : f32
    %26 = vector.broadcast %cst_14 : f32 to vector<1x4xf32>
    %cst_15 = arith.constant 0.000000e+00 : f32
    %27 = vector.broadcast %cst_15 : f32 to vector<1x4xf32>
    %c0_16 = arith.constant 0 : index
    %c0_17 = arith.constant 0 : index
    %c0_18 = arith.constant 0 : index
    %28 = vector.load %arg6[%c0_16, %c0_17, %c0_18] : memref<10x10x8xbf16, #tpu.memory_space<vmem>>, vector<8x8x8xbf16>
    %29 = vector.shape_cast %28 : vector<8x8x8xbf16> to vector<64x8xbf16>
    %c0_19 = arith.constant 0 : index
    %c1_20 = arith.constant 1 : index
    %c0_21 = arith.constant 0 : index
    %30 = vector.load %arg6[%c0_19, %c1_20, %c0_21] : memref<10x10x8xbf16, #tpu.memory_space<vmem>>, vector<8x8x8xbf16>
    %31 = vector.shape_cast %30 : vector<8x8x8xbf16> to vector<64x8xbf16>
    %c1_22 = arith.constant 1 : index
    %c0_23 = arith.constant 0 : index
    %c0_24 = arith.constant 0 : index
    %32 = vector.load %arg6[%c1_22, %c0_23, %c0_24] : memref<10x10x8xbf16, #tpu.memory_space<vmem>>, vector<8x8x8xbf16>
    %33 = vector.shape_cast %32 : vector<8x8x8xbf16> to vector<64x8xbf16>
    %c1_25 = arith.constant 1 : index
    %c1_26 = arith.constant 1 : index
    %c0_27 = arith.constant 0 : index
    %34 = vector.load %arg6[%c1_25, %c1_26, %c0_27] : memref<10x10x8xbf16, #tpu.memory_space<vmem>>, vector<8x8x8xbf16>
    %35 = vector.shape_cast %34 : vector<8x8x8xbf16> to vector<64x8xbf16>
    %36 = tpu.concatenate %29, %31, %33, %35 in 1 : vector<64x8xbf16>, vector<64x8xbf16>, vector<64x8xbf16>, vector<64x8xbf16> -> vector<64x32xbf16>
    %c0_28 = arith.constant 0 : index
    %c0_29 = arith.constant 0 : index
    %c0_30 = arith.constant 0 : index
    %37 = vector.load %arg3[%c0_28, %c0_29, %c0_30] : memref<4x32x4xbf16, #tpu.memory_space<vmem>>, vector<1x32x4xbf16>
    %38 = vector.shape_cast %37 : vector<1x32x4xbf16> to vector<32x4xbf16>
    %cst_31 = arith.constant dense<0.000000e+00> : vector<64x4xf32>
    %39 = tpu.matmul %36, %38, %cst_31 {dimension_numbers = #tpu.dot_dimension_numbers<[1], [0], [0], [1], [0, 0, 1, 1], [], []>} : vector<64x32xbf16>, vector<32x4xbf16>, vector<64x4xf32> -> vector<64x4xf32>
    %cst_32 = arith.constant dense<0.000000e+00> : vector<4xf32>
    %40 = vector.multi_reduction <add>, %39, %cst_32 [0] : vector<64x4xf32> to vector<4xf32>
    %41 = vector.shape_cast %40 : vector<4xf32> to vector<1x4xf32>
    %42 = arith.addf %26, %41 : vector<1x4xf32>
    %43 = arith.mulf %39, %39 : vector<64x4xf32>
    %cst_33 = arith.constant dense<0.000000e+00> : vector<4xf32>
    %44 = vector.multi_reduction <add>, %43, %cst_33 [0] : vector<64x4xf32> to vector<4xf32>
    %45 = vector.shape_cast %44 : vector<4xf32> to vector<1x4xf32>
    %46 = arith.addf %27, %45 : vector<1x4xf32>
    %47 = vector.shape_cast %39 : vector<64x4xf32> to vector<8x8x4xf32>
    %48 = arith.truncf %47 : vector<8x8x4xf32> to vector<8x8x4xbf16>
    %c0_34 = arith.constant 0 : index
    %c1_35 = arith.constant 1 : index
    %c0_36 = arith.constant 0 : index
    %49 = vector.load %arg6[%c0_34, %c1_35, %c0_36] : memref<10x10x8xbf16, #tpu.memory_space<vmem>>, vector<8x8x8xbf16>
    %50 = vector.shape_cast %49 : vector<8x8x8xbf16> to vector<64x8xbf16>
    %c0_37 = arith.constant 0 : index
    %c2 = arith.constant 2 : index
    %c0_38 = arith.constant 0 : index
    %51 = vector.load %arg6[%c0_37, %c2, %c0_38] : memref<10x10x8xbf16, #tpu.memory_space<vmem>>, vector<8x8x8xbf16>
    %52 = vector.shape_cast %51 : vector<8x8x8xbf16> to vector<64x8xbf16>
    %c1_39 = arith.constant 1 : index
    %c1_40 = arith.constant 1 : index
    %c0_41 = arith.constant 0 : index
    %53 = vector.load %arg6[%c1_39, %c1_40, %c0_41] : memref<10x10x8xbf16, #tpu.memory_space<vmem>>, vector<8x8x8xbf16>
    %54 = vector.shape_cast %53 : vector<8x8x8xbf16> to vector<64x8xbf16>
    %c1_42 = arith.constant 1 : index
    %c2_43 = arith.constant 2 : index
    %c0_44 = arith.constant 0 : index
    %55 = vector.load %arg6[%c1_42, %c2_43, %c0_44] : memref<10x10x8xbf16, #tpu.memory_space<vmem>>, vector<8x8x8xbf16>
    %56 = vector.shape_cast %55 : vector<8x8x8xbf16> to vector<64x8xbf16>
    %57 = tpu.concatenate %50, %52, %54, %56 in 1 : vector<64x8xbf16>, vector<64x8xbf16>, vector<64x8xbf16>, vector<64x8xbf16> -> vector<64x32xbf16>
    %c1_45 = arith.constant 1 : index
    %c0_46 = arith.constant 0 : index
    %c0_47 = arith.constant 0 : index
    %58 = vector.load %arg3[%c1_45, %c0_46, %c0_47] : memref<4x32x4xbf16, #tpu.memory_space<vmem>>, vector<1x32x4xbf16>
    %59 = vector.shape_cast %58 : vector<1x32x4xbf16> to vector<32x4xbf16>
    %cst_48 = arith.constant dense<0.000000e+00> : vector<64x4xf32>
    %60 = tpu.matmul %57, %59, %cst_48 {dimension_numbers = #tpu.dot_dimension_numbers<[1], [0], [0], [1], [0, 0, 1, 1], [], []>} : vector<64x32xbf16>, vector<32x4xbf16>, vector<64x4xf32> -> vector<64x4xf32>
    %cst_49 = arith.constant dense<0.000000e+00> : vector<4xf32>
    %61 = vector.multi_reduction <add>, %60, %cst_49 [0] : vector<64x4xf32> to vector<4xf32>
    %62 = vector.shape_cast %61 : vector<4xf32> to vector<1x4xf32>
    %63 = arith.addf %42, %62 : vector<1x4xf32>
    %64 = arith.mulf %60, %60 : vector<64x4xf32>
    %cst_50 = arith.constant dense<0.000000e+00> : vector<4xf32>
    %65 = vector.multi_reduction <add>, %64, %cst_50 [0] : vector<64x4xf32> to vector<4xf32>
    %66 = vector.shape_cast %65 : vector<4xf32> to vector<1x4xf32>
    %67 = arith.addf %46, %66 : vector<1x4xf32>
    %68 = vector.shape_cast %60 : vector<64x4xf32> to vector<8x8x4xf32>
    %69 = arith.truncf %68 : vector<8x8x4xf32> to vector<8x8x4xbf16>
    %c1_51 = arith.constant 1 : index
    %c0_52 = arith.constant 0 : index
    %c0_53 = arith.constant 0 : index
    %70 = vector.load %arg6[%c1_51, %c0_52, %c0_53] : memref<10x10x8xbf16, #tpu.memory_space<vmem>>, vector<8x8x8xbf16>
    %71 = vector.shape_cast %70 : vector<8x8x8xbf16> to vector<64x8xbf16>
    %c1_54 = arith.constant 1 : index
    %c1_55 = arith.constant 1 : index
    %c0_56 = arith.constant 0 : index
    %72 = vector.load %arg6[%c1_54, %c1_55, %c0_56] : memref<10x10x8xbf16, #tpu.memory_space<vmem>>, vector<8x8x8xbf16>
    %73 = vector.shape_cast %72 : vector<8x8x8xbf16> to vector<64x8xbf16>
    %c2_57 = arith.constant 2 : index
    %c0_58 = arith.constant 0 : index
    %c0_59 = arith.constant 0 : index
    %74 = vector.load %arg6[%c2_57, %c0_58, %c0_59] : memref<10x10x8xbf16, #tpu.memory_space<vmem>>, vector<8x8x8xbf16>
    %75 = vector.shape_cast %74 : vector<8x8x8xbf16> to vector<64x8xbf16>
    %c2_60 = arith.constant 2 : index
    %c1_61 = arith.constant 1 : index
    %c0_62 = arith.constant 0 : index
    %76 = vector.load %arg6[%c2_60, %c1_61, %c0_62] : memref<10x10x8xbf16, #tpu.memory_space<vmem>>, vector<8x8x8xbf16>
    %77 = vector.shape_cast %76 : vector<8x8x8xbf16> to vector<64x8xbf16>
    %78 = tpu.concatenate %71, %73, %75, %77 in 1 : vector<64x8xbf16>, vector<64x8xbf16>, vector<64x8xbf16>, vector<64x8xbf16> -> vector<64x32xbf16>
    %c2_63 = arith.constant 2 : index
    %c0_64 = arith.constant 0 : index
    %c0_65 = arith.constant 0 : index
    %79 = vector.load %arg3[%c2_63, %c0_64, %c0_65] : memref<4x32x4xbf16, #tpu.memory_space<vmem>>, vector<1x32x4xbf16>
    %80 = vector.shape_cast %79 : vector<1x32x4xbf16> to vector<32x4xbf16>
    %cst_66 = arith.constant dense<0.000000e+00> : vector<64x4xf32>
    %81 = tpu.matmul %78, %80, %cst_66 {dimension_numbers = #tpu.dot_dimension_numbers<[1], [0], [0], [1], [0, 0, 1, 1], [], []>} : vector<64x32xbf16>, vector<32x4xbf16>, vector<64x4xf32> -> vector<64x4xf32>
    %cst_67 = arith.constant dense<0.000000e+00> : vector<4xf32>
    %82 = vector.multi_reduction <add>, %81, %cst_67 [0] : vector<64x4xf32> to vector<4xf32>
    %83 = vector.shape_cast %82 : vector<4xf32> to vector<1x4xf32>
    %84 = arith.addf %63, %83 : vector<1x4xf32>
    %85 = arith.mulf %81, %81 : vector<64x4xf32>
    %cst_68 = arith.constant dense<0.000000e+00> : vector<4xf32>
    %86 = vector.multi_reduction <add>, %85, %cst_68 [0] : vector<64x4xf32> to vector<4xf32>
    %87 = vector.shape_cast %86 : vector<4xf32> to vector<1x4xf32>
    %88 = arith.addf %67, %87 : vector<1x4xf32>
    %89 = vector.shape_cast %81 : vector<64x4xf32> to vector<8x8x4xf32>
    %90 = arith.truncf %89 : vector<8x8x4xf32> to vector<8x8x4xbf16>
    %c1_69 = arith.constant 1 : index
    %c1_70 = arith.constant 1 : index
    %c0_71 = arith.constant 0 : index
    %91 = vector.load %arg6[%c1_69, %c1_70, %c0_71] : memref<10x10x8xbf16, #tpu.memory_space<vmem>>, vector<8x8x8xbf16>
    %92 = vector.shape_cast %91 : vector<8x8x8xbf16> to vector<64x8xbf16>
    %c1_72 = arith.constant 1 : index
    %c2_73 = arith.constant 2 : index
    %c0_74 = arith.constant 0 : index
    %93 = vector.load %arg6[%c1_72, %c2_73, %c0_74] : memref<10x10x8xbf16, #tpu.memory_space<vmem>>, vector<8x8x8xbf16>
    %94 = vector.shape_cast %93 : vector<8x8x8xbf16> to vector<64x8xbf16>
    %c2_75 = arith.constant 2 : index
    %c1_76 = arith.constant 1 : index
    %c0_77 = arith.constant 0 : index
    %95 = vector.load %arg6[%c2_75, %c1_76, %c0_77] : memref<10x10x8xbf16, #tpu.memory_space<vmem>>, vector<8x8x8xbf16>
    %96 = vector.shape_cast %95 : vector<8x8x8xbf16> to vector<64x8xbf16>
    %c2_78 = arith.constant 2 : index
    %c2_79 = arith.constant 2 : index
    %c0_80 = arith.constant 0 : index
    %97 = vector.load %arg6[%c2_78, %c2_79, %c0_80] : memref<10x10x8xbf16, #tpu.memory_space<vmem>>, vector<8x8x8xbf16>
    %98 = vector.shape_cast %97 : vector<8x8x8xbf16> to vector<64x8xbf16>
    %99 = tpu.concatenate %92, %94, %96, %98 in 1 : vector<64x8xbf16>, vector<64x8xbf16>, vector<64x8xbf16>, vector<64x8xbf16> -> vector<64x32xbf16>
    %c3 = arith.constant 3 : index
    %c0_81 = arith.constant 0 : index
    %c0_82 = arith.constant 0 : index
    %100 = vector.load %arg3[%c3, %c0_81, %c0_82] : memref<4x32x4xbf16, #tpu.memory_space<vmem>>, vector<1x32x4xbf16>
    %101 = vector.shape_cast %100 : vector<1x32x4xbf16> to vector<32x4xbf16>
    %cst_83 = arith.constant dense<0.000000e+00> : vector<64x4xf32>
    %102 = tpu.matmul %99, %101, %cst_83 {dimension_numbers = #tpu.dot_dimension_numbers<[1], [0], [0], [1], [0, 0, 1, 1], [], []>} : vector<64x32xbf16>, vector<32x4xbf16>, vector<64x4xf32> -> vector<64x4xf32>
    %cst_84 = arith.constant dense<0.000000e+00> : vector<4xf32>
    %103 = vector.multi_reduction <add>, %102, %cst_84 [0] : vector<64x4xf32> to vector<4xf32>
    %104 = vector.shape_cast %103 : vector<4xf32> to vector<1x4xf32>
    %105 = arith.addf %84, %104 : vector<1x4xf32>
    %106 = arith.mulf %102, %102 : vector<64x4xf32>
    %cst_85 = arith.constant dense<0.000000e+00> : vector<4xf32>
    %107 = vector.multi_reduction <add>, %106, %cst_85 [0] : vector<64x4xf32> to vector<4xf32>
    %108 = vector.shape_cast %107 : vector<4xf32> to vector<1x4xf32>
    %109 = arith.addf %88, %108 : vector<1x4xf32>
    %110 = vector.shape_cast %102 : vector<64x4xf32> to vector<8x8x4xf32>
    %111 = arith.truncf %110 : vector<8x8x4xf32> to vector<8x8x4xbf16>
    %112 = tpu.concatenate %48, %69, %90, %111 in 2 : vector<8x8x4xbf16>, vector<8x8x4xbf16>, vector<8x8x4xbf16>, vector<8x8x4xbf16> -> vector<8x8x16xbf16>
    %c0_86 = arith.constant 0 : index
    %c0_87 = arith.constant 0 : index
    %c0_88 = arith.constant 0 : index
    %c0_89 = arith.constant 0 : index
    %113 = vector.load %arg4[%c0_86, %c0_87, %c0_88, %c0_89] : memref<1x8x8x16xbf16, #tpu.memory_space<vmem>>, vector<1x8x8x16xbf16>
    %114 = vector.shape_cast %113 : vector<1x8x8x16xbf16> to vector<8x8x16xbf16>
    %115 = vector.shape_cast %112 : vector<8x8x16xbf16> to vector<1x8x8x16xbf16>
    tpu.vector_store %arg4[%c0_86, %c0_87, %c0_88, %c0_89], %115 {strides = array<i32>} : memref<1x8x8x16xbf16, #tpu.memory_space<vmem>>, vector<1x8x8x16xbf16>,
    %116 = tpu.concatenate %105, %109 in 0 : vector<1x4xf32>, vector<1x4xf32> -> vector<2x4xf32>
    %c0_90 = arith.constant 0 : index
    %c0_91 = arith.constant 0 : index
    %c0_92 = arith.constant 0 : index
    %117 = vector.load %arg5[%c0_90, %c0_91, %c0_92] : memref<1x2x4xf32, #tpu.memory_space<vmem>>, vector<1x2x4xf32>
    %118 = vector.shape_cast %117 : vector<1x2x4xf32> to vector<2x4xf32>
    %119 = vector.shape_cast %116 : vector<2x4xf32> to vector<1x2x4xf32>
    tpu.vector_store %arg5[%c0_90, %c0_91, %c0_92], %119 {strides = array<i32>} : memref<1x2x4xf32, #tpu.memory_space<vmem>>, vector<1x2x4xf32>,
    return
  }
  func.func @transform_0(%arg0: i32) -> (i32, i32, i32, i32) {
    %c0_i32 = arith.constant 0 : i32
    %c0_i32_0 = arith.constant 0 : i32
    %c0_i32_1 = arith.constant 0 : i32
    %c0_i32_2 = arith.constant 0 : i32
    return %arg0, %c0_i32, %c0_i32_0, %c0_i32_1 : i32, i32, i32, i32
  }
  func.func @transform_1(%arg0: i32) -> (i32, i32) {
    %c0_i32 = arith.constant 0 : i32
    %c0_i32_0 = arith.constant 0 : i32
    %c0_i32_1 = arith.constant 0 : i32
    return %c0_i32, %c0_i32_0 : i32, i32
  }
  func.func @transform_2(%arg0: i32) -> (i32, i32, i32) {
    %c0_i32 = arith.constant 0 : i32
    %c0_i32_0 = arith.constant 0 : i32
    %c0_i32_1 = arith.constant 0 : i32
    %c0_i32_2 = arith.constant 0 : i32
    return %c0_i32, %c0_i32_0, %c0_i32_1 : i32, i32, i32
  }
  func.func @transform_3(%arg0: i32) -> (i32, i32, i32, i32) {
    %c0_i32 = arith.constant 0 : i32
    %c0_i32_0 = arith.constant 0 : i32
    %c0_i32_1 = arith.constant 0 : i32
    %c0_i32_2 = arith.constant 0 : i32
    return %arg0, %c0_i32, %c0_i32_0, %c0_i32_1 : i32, i32, i32, i32
  }
  func.func @transform_4(%arg0: i32) -> (i32, i32, i32) {
    %c0_i32 = arith.constant 0 : i32
    %c0_i32_0 = arith.constant 0 : i32
    %c0_i32_1 = arith.constant 0 : i32
    return %arg0, %c0_i32, %c0_i32_0 : i32, i32, i32
  }
}

</mosaic_0001>

<llo_original>
// kernel: unet_block_innermost.1
$region0: #{unet_block_innermost.1}
  #allocation0 [shape = 'u32[]', space=smem, size = 0x4, offset = 0x4, fixed_abs, tag = 'smem constant byte address 0x4 - core index']
  #allocation1 [shape = 'u32[144,128]{1,0:T(1,128)}', space=vmem, size = 0x12000, scoped, tag = 'internal scratch']
  #allocation2 [shape = 'bf16[10,10,8]{2,1,0:T(8,128)(2,1)}', space=vmem, size = 0xa000, scoped, tag = 'scratch operand']
  %s0 = inlined_call_operand.vmem [shape: f32[2,9,9,16], index: 0, kind: input, shape index: {}]
  %s1 = inlined_call_operand.vmem [shape: bf16[64,8], index: 1, kind: input, shape index: {}]
  %s2 = inlined_call_operand.vmem [shape: bf16[4,32,4], index: 2, kind: input, shape index: {}]
  %s3 = inlined_call_operand.vmem [shape: bf16[2,8,8,16], index: 3, kind: output, shape index: {0}]
  %s4 = inlined_call_operand.vmem [shape: f32[2,2,4], index: 4, kind: output, shape index: {1}]
  %5 = xla_tuple %s3, %s4
  %s6 = sld [smem:[#allocation0]]
  $region53: #{unet_block_innermost.1} parent=0
    _
  %s8 = ssub.s32 1, %s6
  %s9 = scalar_select 0, %s8, %s6
  loop: start=0, step=1, limit=4
  $region2: #{unet_block_innermost.1} parent=0 // loop_pre_header
    _
  $region3: #{unet_block_innermost.1} parent=0 // loop_header
    %s11 = sphi 0, %s15
    %p12 = scmp.ge.s32.totalorder %s11, 4
    %s21 = sphi 0, %s23
    %s24 = sphi 0, %s21
    %s25 = sphi 0, %s24
    %s41 = sphi 0, %s25
    %s45 = sphi 0, %s45
    %s47 = sphi 0, %s45
    %s48 = sphi 0, %s47
    %s62 = sphi 0, %s48
    %s66 = sphi 0, %s66
    %s68 = sphi 0, %s66
    %s69 = sphi 0, %s68
    %s83 = sphi 0, %s69
    %s89 = sphi 0, %s91
    %s92 = sphi 0, %s89
    %s93 = sphi 0, %s92
    %s109 = sphi 0, %s93
    %s115 = sphi 0, %s117
    %s118 = sphi 0, %s115
    %s119 = sphi 0, %s118
    %s135 = sphi 0, %s119
  $region4: #{unet_block_innermost.1} parent=0 // loop_header_branch
    %14 = sbr.rel (%p12) target = $region8
  $region5: #{unet_block_innermost.1} parent=0 // loop_body
    %s16 = ssub.s32 %s11, 1
    %s17 = ssub.s32 %s11, 2
    %s18 = sadd.s32 %s11, 1
    %s19 = ssub.s32 %s11, %s18
    %p20 = scmp.eq.s32.totalorder %s19, 0
    %s22 = sadd.s32 %s21, 1
    %s23 = scalar_select %p20, %s21, %s22
    %p26 = pneg %p20
    %p27 = scmp.eq.s32.totalorder %s11, 1
    %p28 = por %p26, %p27
    %p29 = scmp.ne.s32.totalorder %s21, %s24
    %p30 = scmp.eq.s32.totalorder %s11, 0
    %p31 = por %p29, %p30
    %p32 = scmp.ne.s32.totalorder %s21, %s24
    %p33 = scmp.eq.s32.totalorder %s16, 1
    %p34 = por %p32, %p33
    %p35 = scmp.ne.s32.totalorder %s24, %s25
    %p36 = scmp.eq.s32.totalorder %s16, 0
    %p37 = por %p35, %p36
    %p38 = scmp.ne.s32.totalorder %s24, %s25
    %p39 = scmp.eq.s32.totalorder %s17, 1
    %p40 = por %p38, %p39
    %p42 = scmp.ne.s32.totalorder %s25, %s41
    %p43 = scmp.eq.s32.totalorder %s17, 0
    %p44 = por %p42, %p43
    %s46 = sadd.s32 %s45, 1
    %p49 = scmp.eq.s32.totalorder %s11, 1
    %p50 = scmp.ne.s32.totalorder %s45, %s47
    %p51 = scmp.eq.s32.totalorder %s11, 0
    %p52 = por %p50, %p51
    %p53 = scmp.ne.s32.totalorder %s45, %s47
    %p54 = scmp.eq.s32.totalorder %s16, 1
    %p55 = por %p53, %p54
    %p56 = scmp.ne.s32.totalorder %s47, %s48
    %p57 = scmp.eq.s32.totalorder %s16, 0
    %p58 = por %p56, %p57
    %p59 = scmp.ne.s32.totalorder %s47, %s48
    %p60 = scmp.eq.s32.totalorder %s17, 1
    %p61 = por %p59, %p60
    %p63 = scmp.ne.s32.totalorder %s48, %s62
    %p64 = scmp.eq.s32.totalorder %s17, 0
    %p65 = por %p63, %p64
    %s67 = sadd.s32 %s66, 1
    %p70 = scmp.eq.s32.totalorder %s11, 1
    %p71 = scmp.ne.s32.totalorder %s66, %s68
    %p72 = scmp.eq.s32.totalorder %s11, 0
    %p73 = por %p71, %p72
    %p74 = scmp.ne.s32.totalorder %s66, %s68
    %p75 = scmp.eq.s32.totalorder %s16, 1
    %p76 = por %p74, %p75
    %p77 = scmp.ne.s32.totalorder %s68, %s69
    %p78 = scmp.eq.s32.totalorder %s16, 0
    %p79 = por %p77, %p78
    %p80 = scmp.ne.s32.totalorder %s68, %s69
    %p81 = scmp.eq.s32.totalorder %s17, 1
    %p82 = por %p80, %p81
    %p84 = scmp.ne.s32.totalorder %s69, %s83
    %p85 = scmp.eq.s32.totalorder %s17, 0
    %p86 = por %p84, %p85
    %s87 = ssub.s32 %s11, %s18
    %p88 = scmp.eq.s32.totalorder %s87, 0
    %s90 = sadd.s32 %s89, 1
    %s91 = scalar_select %p88, %s89, %s90
    %p94 = pneg %p88
    %p95 = scmp.eq.s32.totalorder %s11, 1
    %p96 = por %p94, %p95
    %p97 = scmp.ne.s32.totalorder %s89, %s92
    %p98 = scmp.eq.s32.totalorder %s11, 0
    %p99 = por %p97, %p98
    %p100 = scmp.ne.s32.totalorder %s89, %s92
    %p101 = scmp.eq.s32.totalorder %s16, 1
    %p102 = por %p100, %p101
    %p103 = scmp.ne.s32.totalorder %s92, %s93
    %p104 = scmp.eq.s32.totalorder %s16, 0
    %p105 = por %p103, %p104
    %p106 = scmp.ne.s32.totalorder %s92, %s93
    %p107 = scmp.eq.s32.totalorder %s17, 1
    %p108 = por %p106, %p107
    %p110 = scmp.ne.s32.totalorder %s93, %s109
    %p111 = scmp.eq.s32.totalorder %s17, 0
    %p112 = por %p110, %p111
    %s113 = ssub.s32 %s11, %s18
    %p114 = scmp.eq.s32.totalorder %s113, 0
    %s116 = sadd.s32 %s115, 1
    %s117 = scalar_select %p114, %s115, %s116
    %p120 = pneg %p114
    %p121 = scmp.eq.s32.totalorder %s11, 1
    %p122 = por %p120, %p121
    %p123 = scmp.ne.s32.totalorder %s115, %s118
    %p124 = scmp.eq.s32.totalorder %s11, 0
    %p125 = por %p123, %p124
    %p126 = scmp.ne.s32.totalorder %s115, %s118
    %p127 = scmp.eq.s32.totalorder %s16, 1
    %p128 = por %p126, %p127
    %p129 = scmp.ne.s32.totalorder %s118, %s119
    %p130 = scmp.eq.s32.totalorder %s16, 0
    %p131 = por %p129, %p130
    %p132 = scmp.ne.s32.totalorder %s118, %s119
    %p133 = scmp.eq.s32.totalorder %s17, 1
    %p134 = por %p132, %p133
    %p136 = scmp.ne.s32.totalorder %s119, %s135
    %p137 = scmp.eq.s32.totalorder %s17, 0
    %p138 = por %p136, %p137
    %p139 = scmp.le.s32.totalorder 1, %s11
    %p140 = scmp.lt.s32.totalorder %s11, 3
    %p141 = pnand %p139, %p140
    %p142 = pneg %p141
    // Predicated region
    $region9: #{unet_block_innermost.1} parent=5 // pred_check
      _
    $region10: #{unet_block_innermost.1} parent=5 // pred_check_branch
      %144 = sbr.rel (%p141) target = $region12
    $region11: #{unet_block_innermost.1} parent=5 // pred_region
      %s145 = ssub.s32 %s11, 1
      // Predicated region
      $region13: #{unet_block_innermost.1} parent=11 // pred_check
        %p146 = pneg %p58
      $region14: #{unet_block_innermost.1} parent=11 // pred_check_branch
        %148 = sbr.rel (%p146) target = $region16
      $region15: #{unet_block_innermost.1} parent=11 // pred_region
        _
      $region16: #{unet_block_innermost.1} parent=11 // pred_fallthru
        _
      // Predicated region
      $region17: #{unet_block_innermost.1} parent=11 // pred_check
        %p149 = pneg %p79
      $region18: #{unet_block_innermost.1} parent=11 // pred_check_branch
        %151 = sbr.rel (%p149) target = $region20
      $region19: #{unet_block_innermost.1} parent=11 // pred_region
        _
      $region20: #{unet_block_innermost.1} parent=11 // pred_fallthru
        _
    $region12: #{unet_block_innermost.1} parent=5 // pred_fallthru
      _
    %p152 = scmp.lt.s32.totalorder %s11, 2
    // Predicated region
    $region21: #{unet_block_innermost.1} parent=5 // pred_check
      %p153 = pneg %p152
    $region22: #{unet_block_innermost.1} parent=5 // pred_check_branch
      %155 = sbr.rel (%p153) target = $region24
    $region23: #{unet_block_innermost.1} parent=5 // pred_region
      // Predicated region
      $region25: #{unet_block_innermost.1} parent=23 // pred_check
        %p156 = pneg %p31
      $region26: #{unet_block_innermost.1} parent=23 // pred_check_branch
        %158 = sbr.rel (%p156) target = $region28
      $region27: #{unet_block_innermost.1} parent=23 // pred_region
        %p159 = scmp.lt.s32.totalorder %s11, 1
        %s160 = scalar_select %p159, %s11, 1
        %s161 = smul.addr %s160, 18
        %s162 = smul.addr %s161, 8
        %s163 = scalar_lea.vmem %s0, %s162
      $region28: #{unet_block_innermost.1} parent=23 // pred_fallthru
        _
    $region24: #{unet_block_innermost.1} parent=5 // pred_fallthru
      _
    %p164 = scmp.le.s32.totalorder 1, %s11
    %p165 = scmp.lt.s32.totalorder %s11, 3
    %p166 = pnand %p164, %p165
    %p167 = pneg %p166
    // Predicated region
    $region29: #{unet_block_innermost.1} parent=5 // pred_check
      _
    $region30: #{unet_block_innermost.1} parent=5 // pred_check_branch
      %169 = sbr.rel (%p166) target = $region32
    $region31: #{unet_block_innermost.1} parent=5 // pred_region
      %s170 = ssub.s32 %s11, 1
      %p171 = scmp.lt.s32.totalorder %s16, 1
      %s172 = scalar_select %p171, %s16, 1
      %s173 = smul.addr %s172, 18
      %s174 = smul.addr %s173, 8
      %s175 = scalar_lea.vmem %s0, %s174
      %p176 = pneg %p37
      %p177 = pneg %p34
      %p178 = pneg %p58
      %p179 = pneg %p55
      %p180 = pneg %p79
      %p181 = pneg %p76
      %p182 = pneg %p105
      %p183 = pneg %p102
      %p184 = scmp.lt.s32.totalorder %s16, 1
      %s185 = scalar_select %p184, %s16, 1
      %s186 = smul.addr %s185, 8
      %s187 = smul.addr %s186, 4
      %s188 = scalar_lea.vmem %s3, %s187
      %p189 = pneg %p131
      %p190 = pneg %p128
      %p191 = scmp.lt.s32.totalorder %s16, 1
      %s192 = scalar_select %p191, %s16, 1
      %s193 = smul.addr %s192, 2
      %s194 = scalar_lea.vmem %s4, %s193
      %p195 = scmp.lt.s32.totalorder %s16, 1
      %s196 = scalar_select %p195, %s16, 1
      %s197 = smul.addr %s196, 18
      %s198 = smul.addr %s197, 8
      %s199 = scalar_lea.vmem %s0, %s198
      %p200 = scmp.lt.s32.totalorder %s16, 1
      %s201 = scalar_select %p200, %s16, 1
      %s202 = smul.addr %s201, 8
      %s203 = smul.addr %s202, 4
      %s204 = scalar_lea.vmem %s3, %s203
      %p205 = scmp.lt.s32.totalorder %s16, 1
      %s206 = scalar_select %p205, %s16, 1
      %s207 = smul.addr %s206, 2
      %s208 = scalar_lea.vmem %s4, %s207
      %v210 = vld [vmem:[%s199] sm:$0xff]
      %v211 = vld [vmem:[%s199 + $0x8] sm:$0x1]
      %v212 = vld [vmem:[%s199 + $0x10] sm:$0xff]
      %v213 = vld [vmem:[%s199 + $0x18] sm:$0x1]
      %v214 = vld [vmem:[%s199 + $0x20] sm:$0xff]
      %v215 = vld [vmem:[%s199 + $0x28] sm:$0x1]
      %v216 = vld [vmem:[%s199 + $0x30] sm:$0xff]
      %v217 = vld [vmem:[%s199 + $0x38] sm:$0x1]
      %v218 = vld [vmem:[%s199 + $0x40] sm:$0xff]
      %v219 = vld [vmem:[%s199 + $0x48] sm:$0x1]
      %v220 = vld [vmem:[%s199 + $0x50] sm:$0xff]
      %v221 = vld [vmem:[%s199 + $0x58] sm:$0x1]
      %v222 = vld [vmem:[%s199 + $0x60] sm:$0xff]
      %v223 = vld [vmem:[%s199 + $0x68] sm:$0x1]
      %v224 = vld [vmem:[%s199 + $0x70] sm:$0xff]
      %v225 = vld [vmem:[%s199 + $0x78] sm:$0x1]
      %v226 = vld [vmem:[%s199 + $0x80] sm:$0xff]
      %v227 = vld [vmem:[%s199 + $0x88] sm:$0x1]
      %vm228 = vcmp.ge.f32.partialorder %v210, 0.0
      %vm229 = vcmp.ge.f32.partialorder %v211, 0.0
      %vm230 = vcmp.ge.f32.partialorder %v212, 0.0
      %vm231 = vcmp.ge.f32.partialorder %v213, 0.0
      %vm232 = vcmp.ge.f32.partialorder %v214, 0.0
      %vm233 = vcmp.ge.f32.partialorder %v215, 0.0
      %vm234 = vcmp.ge.f32.partialorder %v216, 0.0
      %vm235 = vcmp.ge.f32.partialorder %v217, 0.0
      %vm236 = vcmp.ge.f32.partialorder %v218, 0.0
      %vm237 = vcmp.ge.f32.partialorder %v219, 0.0
      %vm238 = vcmp.ge.f32.partialorder %v220, 0.0
      %vm239 = vcmp.ge.f32.partialorder %v221, 0.0
      %vm240 = vcmp.ge.f32.partialorder %v222, 0.0
      %vm241 = vcmp.ge.f32.partialorder %v223, 0.0
      %vm242 = vcmp.ge.f32.partialorder %v224, 0.0
      %vm243 = vcmp.ge.f32.partialorder %v225, 0.0
      %vm244 = vcmp.ge.f32.partialorder %v226, 0.0
      %vm245 = vcmp.ge.f32.partialorder %v227, 0.0
      %v246 = vmul.f32 %v210, 0.2
      %v247 = vmul.f32 %v211, 0.2
      %v248 = vmul.f32 %v212, 0.2
      %v249 = vmul.f32 %v213, 0.2
      %v250 = vmul.f32 %v214, 0.2
      %v251 = vmul.f32 %v215, 0.2
      %v252 = vmul.f32 %v216, 0.2
      %v253 = vmul.f32 %v217, 0.2
      %v254 = vmul.f32 %v218, 0.2
      %v255 = vmul.f32 %v219, 0.2
      %v256 = vmul.f32 %v220, 0.2
      %v257 = vmul.f32 %v221, 0.2
      %v258 = vmul.f32 %v222, 0.2
      %v259 = vmul.f32 %v223, 0.2
      %v260 = vmul.f32 %v224, 0.2
      %v261 = vmul.f32 %v225, 0.2
      %v262 = vmul.f32 %v226, 0.2
      %v263 = vmul.f32 %v227, 0.2
      %v264 = vsel %vm228, %v210, %v246
      %v265 = vsel %vm229, %v211, %v247
      %v266 = vsel %vm230, %v212, %v248
      %v267 = vsel %vm231, %v213, %v249
      %v268 = vsel %vm232, %v214, %v250
      %v269 = vsel %vm233, %v215, %v251
      %v270 = vsel %vm234, %v216, %v252
      %v271 = vsel %vm235, %v217, %v253
      %v272 = vsel %vm236, %v218, %v254
      %v273 = vsel %vm237, %v219, %v255
      %v274 = vsel %vm238, %v220, %v256
      %v275 = vsel %vm239, %v221, %v257
      %v276 = vsel %vm240, %v222, %v258
      %v277 = vsel %vm241, %v223, %v259
      %v278 = vsel %vm242, %v224, %v260
      %v279 = vsel %vm243, %v225, %v261
      %v280 = vsel %vm244, %v226, %v262
      %v281 = vsel %vm245, %v227, %v263
      %v282 = vpack.c.bf16 %v265, %v264
      %v283 = vpack.c.bf16 %v267, %v266
      %v284 = vpack.c.bf16 %v269, %v268
      %v285 = vpack.c.bf16 %v271, %v270
      %v286 = vpack.c.bf16 %v273, %v272
      %v287 = vpack.c.bf16 %v275, %v274
      %v288 = vpack.c.bf16 %v277, %v276
      %v289 = vpack.c.bf16 %v279, %v278
      %v290 = vpack.c.bf16 %v281, %v280
      %v299 = vunpack.c.l.b16 %v282
      %v300 = vunpack.c.h.b16 %v282
      %v301 = vunpack.c.l.b16 %v283
      %v302 = vunpack.c.h.b16 %v283
      %v303 = vunpack.c.l.b16 %v284
      %v304 = vunpack.c.h.b16 %v284
      %v305 = vunpack.c.l.b16 %v285
      %v306 = vunpack.c.h.b16 %v285
      %v307 = vunpack.c.l.b16 %v286
      %v308 = vunpack.c.h.b16 %v286
      %v309 = vunpack.c.l.b16 %v287
      %v310 = vunpack.c.h.b16 %v287
      %v311 = vunpack.c.l.b16 %v288
      %v312 = vunpack.c.h.b16 %v288
      %v313 = vunpack.c.l.b16 %v289
      %v314 = vunpack.c.h.b16 %v289
      %v315 = vpack.c.b16 %v299, %v299
      %v316 = vpack.c.b16 %v300, %v300
      %v317 = vpack.c.b16 %v301, %v301
      %v318 = vpack.c.b16 %v302, %v302
      %v319 = vpack.c.b16 %v303, %v303
      %v320 = vpack.c.b16 %v304, %v304
      %v321 = vpack.c.b16 %v305, %v305
      %v322 = vpack.c.b16 %v306, %v306
      %v323 = vpack.c.b16 %v307, %v307
      %v324 = vpack.c.b16 %v308, %v308
      %v325 = vpack.c.b16 %v309, %v309
      %v326 = vpack.c.b16 %v310, %v310
      %v327 = vpack.c.b16 %v311, %v311
      %v328 = vpack.c.b16 %v312, %v312
      %v329 = vpack.c.b16 %v313, %v313
      %v330 = vpack.c.b16 %v314, %v314
      %vm331 = vsmask.f32 3328
      %vm332 = vsmask.f32 7440
      %vm333 = vmor %vm331, %vm332
      %v335 = vshrl.u32 %v315, 16
      %v337 = vrot.slane %v335, 4
      %v338 = vshll.u32 %v315, 16
      %v340 = vrot.slane %v338, 5
      %v341 = vor.u32 %v337, %v340
      %v342 = vrot.slane %v341, 4
      %v344 = vshll.u32 %v316, 16
      %v346 = vrot.slane %v344, 5
      %v347 = vsel %vm333, %v342, %v346
      %v349 = vshrl.u32 %v317, 16
      %v351 = vrot.slane %v349, 4
      %v352 = vshll.u32 %v317, 16
      %v354 = vrot.slane %v352, 5
      %v355 = vor.u32 %v351, %v354
      %v356 = vrot.slane %v355, 4
      %v358 = vshll.u32 %v318, 16
      %v360 = vrot.slane %v358, 5
      %v361 = vsel %vm333, %v356, %v360
      %v363 = vshrl.u32 %v319, 16
      %v365 = vrot.slane %v363, 4
      %v366 = vshll.u32 %v319, 16
      %v368 = vrot.slane %v366, 5
      %v369 = vor.u32 %v365, %v368
      %v370 = vrot.slane %v369, 4
      %v372 = vshll.u32 %v320, 16
      %v374 = vrot.slane %v372, 5
      %v375 = vsel %vm333, %v370, %v374
      %v377 = vshrl.u32 %v321, 16
      %v379 = vrot.slane %v377, 4
      %v380 = vshll.u32 %v321, 16
      %v382 = vrot.slane %v380, 5
      %v383 = vor.u32 %v379, %v382
      %v384 = vrot.slane %v383, 4
      %v386 = vshll.u32 %v322, 16
      %v388 = vrot.slane %v386, 5
      %v389 = vsel %vm333, %v384, %v388
      %v391 = vshrl.u32 %v323, 16
      %v393 = vrot.slane %v391, 4
      %v394 = vshll.u32 %v323, 16
      %v396 = vrot.slane %v394, 5
      %v397 = vor.u32 %v393, %v396
      %v398 = vrot.slane %v397, 4
      %v400 = vshll.u32 %v324, 16
      %v402 = vrot.slane %v400, 5
      %v403 = vsel %vm333, %v398, %v402
      %v405 = vshrl.u32 %v325, 16
      %v407 = vrot.slane %v405, 4
      %v408 = vshll.u32 %v325, 16
      %v410 = vrot.slane %v408, 5
      %v411 = vor.u32 %v407, %v410
      %v412 = vrot.slane %v411, 4
      %v414 = vshll.u32 %v326, 16
      %v416 = vrot.slane %v414, 5
      %v417 = vsel %vm333, %v412, %v416
      %v419 = vshrl.u32 %v327, 16
      %v421 = vrot.slane %v419, 4
      %v422 = vshll.u32 %v327, 16
      %v424 = vrot.slane %v422, 5
      %v425 = vor.u32 %v421, %v424
      %v426 = vrot.slane %v425, 4
      %v428 = vshll.u32 %v328, 16
      %v430 = vrot.slane %v428, 5
      %v431 = vsel %vm333, %v426, %v430
      %v433 = vshrl.u32 %v329, 16
      %v435 = vrot.slane %v433, 4
      %v436 = vshll.u32 %v329, 16
      %v438 = vrot.slane %v436, 5
      %v439 = vor.u32 %v435, %v438
      %v440 = vrot.slane %v439, 4
      %v442 = vshll.u32 %v330, 16
      %v444 = vrot.slane %v442, 5
      %v445 = vsel %vm333, %v440, %v444
      %v447 = vunpack.c.l.b16 %v290
      %v448 = vunpack.c.h.b16 %v290
      %v449 = vpack.c.b16 %v447, %v447
      %v450 = vpack.c.b16 %v448, %v448
      %v452 = vshrl.u32 %v449, 16
      %v454 = vrot.slane %v452, 4
      %v455 = vshll.u32 %v449, 16
      %v457 = vrot.slane %v455, 5
      %v458 = vor.u32 %v454, %v457
      %v459 = vrot.slane %v458, 4
      %v461 = vshll.u32 %v450, 16
      %v463 = vrot.slane %v461, 5
      %v464 = vsel %vm333, %v459, %v463
      %v465 = vpack.c.b16 %v301, %v299
      %v466 = vpack.c.b16 %v305, %v303
      %v467 = vpack.c.b16 %v309, %v307
      %v468 = vpack.c.b16 %v313, %v311
      %v469 = vunpack.c.l.b16 %v347
      %v470 = vunpack.c.l.b16 %v361
      %v471 = vunpack.c.l.b16 %v375
      %v472 = vunpack.c.l.b16 %v389
      %v473 = vunpack.c.l.b16 %v403
      %v474 = vunpack.c.l.b16 %v417
      %v475 = vunpack.c.l.b16 %v431
      %v476 = vunpack.c.l.b16 %v445
      %v477 = vpack.c.b16 %v470, %v469
      %v478 = vpack.c.b16 %v472, %v471
      %v479 = vpack.c.b16 %v474, %v473
      %v480 = vpack.c.b16 %v476, %v475
      %481 = vrot.lane.b32.xlu0 %v477, 16
      %v482 = vpop.permute.xlu0 %481
      %483 = vrot.lane.b32.xlu0 %v478, 16
      %v484 = vpop.permute.xlu0 %483
      %485 = vrot.lane.b32.xlu0 %v479, 16
      %v486 = vpop.permute.xlu0 %485
      %487 = vrot.lane.b32.xlu0 %v480, 16
      %v488 = vpop.permute.xlu0 %487
      %v489 = vpack.c.b16 %v303, %v301
      %v490 = vpack.c.b16 %v307, %v305
      %v491 = vpack.c.b16 %v311, %v309
      %v492 = vpack.c.b16 %v447, %v313
      %493 = vrot.lane.b32.xlu0 %v489, 32
      %v494 = vpop.permute.xlu0 %493
      %495 = vrot.lane.b32.xlu0 %v490, 32
      %v496 = vpop.permute.xlu0 %495
      %497 = vrot.lane.b32.xlu0 %v491, 32
      %v498 = vpop.permute.xlu0 %497
      %499 = vrot.lane.b32.xlu0 %v492, 32
      %v500 = vpop.permute.xlu0 %499
      %v501 = vunpack.c.l.b16 %v464
      %v502 = vpack.c.b16 %v471, %v470
      %v503 = vpack.c.b16 %v473, %v472
      %v504 = vpack.c.b16 %v475, %v474
      %v505 = vpack.c.b16 %v501, %v476
      %506 = vrot.lane.b32.xlu0 %v502, 48
      %v507 = vpop.permute.xlu0 %506
      %508 = vrot.lane.b32.xlu0 %v503, 48
      %v509 = vpop.permute.xlu0 %508
      %510 = vrot.lane.b32.xlu0 %v504, 48
      %v511 = vpop.permute.xlu0 %510
      %512 = vrot.lane.b32.xlu0 %v505, 48
      %v513 = vpop.permute.xlu0 %512
      %vm514 = vcmask 130048
      %v517 = vsel %vm514, %v465, %v482
      %v520 = vsel %vm514, %v466, %v484
      %v523 = vsel %vm514, %v467, %v486
      %v526 = vsel %vm514, %v468, %v488
      %vm527 = vcmask 261120
      %v529 = vsel %vm527, %v517, %v494
      %v531 = vsel %vm527, %v520, %v496
      %v533 = vsel %vm527, %v523, %v498
      %v535 = vsel %vm527, %v526, %v500
      %vm536 = vcmask 392192
      %v538 = vsel %vm536, %v529, %v507
      %v540 = vsel %vm536, %v531, %v509
      %v542 = vsel %vm536, %v533, %v511
      %v544 = vsel %vm536, %v535, %v513
      %v545 = vld [vmem:[%s1] sm:$0xf]
      %v546 = vld [vmem:[%s1 + $0x4] sm:$0xf]
      %v547 = vld [vmem:[%s1 + $0x8] sm:$0xf]
      %v548 = vld [vmem:[%s1 + $0xc] sm:$0xf]
      %v549 = vld [vmem:[%s1 + $0x10] sm:$0xf]
      %v550 = vld [vmem:[%s1 + $0x14] sm:$0xf]
      %v551 = vld [vmem:[%s1 + $0x18] sm:$0xf]
      %v552 = vld [vmem:[%s1 + $0x1c] sm:$0xf]
      %v561 = vunpack.c.l.b16 %v545
      %v562 = vunpack.c.l.b16 %v546
      %v563 = vunpack.c.l.b16 %v547
      %v564 = vunpack.c.l.b16 %v548
      %v565 = vunpack.c.l.b16 %v549
      %v566 = vunpack.c.l.b16 %v550
      %v567 = vunpack.c.l.b16 %v551
      %v568 = vunpack.c.l.b16 %v552
      %v569 = vpack.c.b16 %v562, %v561
      %v570 = vpack.c.b16 %v564, %v563
      %v571 = vpack.c.b16 %v566, %v565
      %v572 = vpack.c.b16 %v568, %v567
      %vm577 = vcmask 523264
      %v578 = vsel %vm577, %v538, 0
      %v580 = vsel %vm577, %v540, 0
      %v582 = vsel %vm577, %v542, 0
      %v584 = vsel %vm577, %v544, 0
      %586 = vmatprep.subr.bf16.mxu0 0
      %587 = vmatpush1.bf16.msra.mxu0 0
      %588 = vmatprep.subr.bf16.mxu0 0
      %589 = vmatpush1.bf16.msra.mxu0 0
      %590 = vmatprep.subr.bf16.mxu0 0
      %591 = vmatpush1.bf16.msra.mxu0 0
      %592 = vmatprep.subr.bf16.mxu0 0
      %593 = vmatpush1.bf16.msra.mxu0 0
      %594 = vmatprep.subr.bf16.mxu0 0
      %595 = vmatpush1.bf16.msra.mxu0 %v572
      %596 = vmatprep.subr.bf16.mxu0 0
      %597 = vmatpush1.bf16.msra.mxu0 %v571
      %598 = vmatprep.subr.bf16.mxu0 0
      %599 = vmatpush1.bf16.msra.mxu0 %v570
      %600 = vmatprep.subr.bf16.mxu0 0
      %601 = vmatpush1.bf16.msra.mxu0 %v569
      %602 = vmatprep.subr.bf16.mxu0 0
      %603 = vmatpush2.bf16.msra.mxu0 0
      %604 = vmatprep.subr.bf16.mxu0 0
      %605 = vmatpush2.bf16.msra.mxu0 0
      %606 = vmatprep.subr.bf16.mxu0 0
      %607 = vmatpush2.bf16.msra.mxu0 0
      %608 = vmatprep.subr.bf16.mxu0 0
      %609 = vmatpush2.bf16.msra.mxu0 0
      %610 = vmatprep.subr.bf16.mxu0 0
      %611 = vmatpush2.bf16.msra.mxu0 0
      %612 = vmatprep.subr.bf16.mxu0 0
      %613 = vmatpush2.bf16.msra.mxu0 0
      %614 = vmatprep.subr.bf16.mxu0 0
      %615 = vmatpush2.bf16.msra.mxu0 0
      %616 = vmatprep.subr.bf16.mxu0 0
      %617 = vmatpush2.bf16.msra.mxu0 0
      %618 = vmatprep.mubr.bf16.mxu0 0
      %619 = vmatmul.mubr.bf16.gmra.mxu0 %v578
      %v620 = vpop.f32.mrf.mxu0
      %v621 = vadd.f32 0.0, %v620
      %v622 = vpop.f32.mrf.mxu0
      %v623 = vpop.f32.mrf.mxu0
      %v624 = vadd.f32 0.0, %v623
      %v625 = vpop.f32.mrf.mxu0
      %626 = vmatprep.mubr.bf16.mxu0 0
      %627 = vmatmul.mubr.bf16.gmra.mxu0 %v580
      %v628 = vpop.f32.mrf.mxu0
      %v629 = vadd.f32 0.0, %v628
      %v630 = vpop.f32.mrf.mxu0
      %v631 = vpop.f32.mrf.mxu0
      %v632 = vadd.f32 0.0, %v631
      %v633 = vpop.f32.mrf.mxu0
      %634 = vmatprep.mubr.bf16.mxu0 0
      %635 = vmatmul.mubr.bf16.gmra.mxu0 %v582
      %v636 = vpop.f32.mrf.mxu0
      %v637 = vadd.f32 0.0, %v636
      %v638 = vpop.f32.mrf.mxu0
      %v639 = vpop.f32.mrf.mxu0
      %v640 = vadd.f32 0.0, %v639
      %v641 = vpop.f32.mrf.mxu0
      %642 = vmatprep.mubr.bf16.mxu0 0
      %643 = vmatmul.mubr.bf16.gmra.mxu0 %v584
      %v644 = vpop.f32.mrf.mxu0
      %v645 = vadd.f32 0.0, %v644
      %v646 = vpop.f32.mrf.mxu0
      %v647 = vpop.f32.mrf.mxu0
      %v648 = vadd.f32 0.0, %v647
      %v649 = vpop.f32.mrf.mxu0
      %650 = vdwg.mxu0
      %v651 = vmax.f32 %v621, 0.0
      %v652 = vmax.f32 %v624, 0.0
      %v653 = vmax.f32 %v629, 0.0
      %v654 = vmax.f32 %v632, 0.0
      %v655 = vmax.f32 %v637, 0.0
      %v656 = vmax.f32 %v640, 0.0
      %v657 = vmax.f32 %v645, 0.0
      %v658 = vmax.f32 %v648, 0.0
      %vm659 = vcmask 60416
      %660 = vst.msk [vmem:[#allocation2] sm:$0xf] %vm659, 0
      %vm661 = vcmask 57344
      %662 = vst.msk [vmem:[#allocation2 + $0x4] sm:$0x1] %vm661, 0
      %663 = vst.msk [vmem:[#allocation2 + $0x8] sm:$0xf] %vm659, 0
      %664 = vst.msk [vmem:[#allocation2 + $0xc] sm:$0x1] %vm661, 0
      %665 = vst.msk [vmem:[#allocation2 + $0x10] sm:$0xf] %vm659, 0
      %666 = vst.msk [vmem:[#allocation2 + $0x14] sm:$0x1] %vm661, 0
      %667 = vst.msk [vmem:[#allocation2 + $0x18] sm:$0xf] %vm659, 0
      %668 = vst.msk [vmem:[#allocation2 + $0x1c] sm:$0x1] %vm661, 0
      %669 = vst.msk [vmem:[#allocation2 + $0x20] sm:$0xf] %vm659, 0
      %670 = vst.msk [vmem:[#allocation2 + $0x24] sm:$0x1] %vm661, 0
      %671 = vst.msk [vmem:[#allocation2 + $0x28] sm:$0xf] %vm659, 0
      %672 = vst.msk [vmem:[#allocation2 + $0x2c] sm:$0x1] %vm661, 0
      %673 = vst.msk [vmem:[#allocation2 + $0x30] sm:$0xf] %vm659, 0
      %674 = vst.msk [vmem:[#allocation2 + $0x34] sm:$0x1] %vm661, 0
      %675 = vst.msk [vmem:[#allocation2 + $0x38] sm:$0xf] %vm659, 0
      %676 = vst.msk [vmem:[#allocation2 + $0x3c] sm:$0x1] %vm661, 0
      %677 = vst.msk [vmem:[#allocation2 + $0x40] sm:$0xf] %vm659, 0
      %678 = vst.msk [vmem:[#allocation2 + $0x44] sm:$0x1] %vm661, 0
      %679 = vst.msk [vmem:[#allocation2 + $0x48] sm:$0xf] %vm659, 0
      %680 = vst.msk [vmem:[#allocation2 + $0x4c] sm:$0x1] %vm661, 0
      %v681 = vpack.c.bf16 %v651, %v651
      %v682 = vpack.c.bf16 %v652, %v652
      %v683 = vpack.c.bf16 %v653, %v653
      %v684 = vpack.c.bf16 %v654, %v654
      %v685 = vpack.c.bf16 %v655, %v655
      %v686 = vpack.c.bf16 %v656, %v656
      %v687 = vpack.c.bf16 %v657, %v657
      %v688 = vpack.c.bf16 %v658, %v658
      %v697 = vunpack.c.l.b16 %v681
      %v698 = vunpack.c.l.b16 %v682
      %v699 = vunpack.c.l.b16 %v683
      %v700 = vunpack.c.l.b16 %v684
      %v701 = vunpack.c.l.b16 %v685
      %v702 = vunpack.c.l.b16 %v686
      %v703 = vunpack.c.l.b16 %v687
      %v704 = vunpack.c.l.b16 %v688
      %v705 = vpack.c.b16 %v697, %v697
      %v706 = vpack.c.b16 %v698, %v698
      %v707 = vpack.c.b16 %v699, %v699
      %v708 = vpack.c.b16 %v700, %v700
      %v709 = vpack.c.b16 %v701, %v701
      %v710 = vpack.c.b16 %v702, %v702
      %v711 = vpack.c.b16 %v703, %v703
      %v712 = vpack.c.b16 %v704, %v704
      %v714 = vshrl.u32 %v705, 16
      %v716 = vrot.slane %v714, 7
      %v717 = vshll.u32 %v705, 16
      %v719 = vor.u32 %v716, %v717
      %v720 = vrot.slane %v716, 4
      %v722 = vshrl.u32 %v706, 16
      %v724 = vrot.slane %v722, 7
      %v725 = vshll.u32 %v706, 16
      %v727 = vor.u32 %v724, %v725
      %v728 = vrot.slane %v724, 4
      %v730 = vshrl.u32 %v707, 16
      %v732 = vrot.slane %v730, 7
      %v733 = vshll.u32 %v707, 16
      %v735 = vor.u32 %v732, %v733
      %v736 = vrot.slane %v732, 4
      %v738 = vshrl.u32 %v708, 16
      %v740 = vrot.slane %v738, 7
      %v741 = vshll.u32 %v708, 16
      %v743 = vor.u32 %v740, %v741
      %v744 = vrot.slane %v740, 4
      %v746 = vshrl.u32 %v709, 16
      %v748 = vrot.slane %v746, 7
      %v749 = vshll.u32 %v709, 16
      %v751 = vor.u32 %v748, %v749
      %v752 = vrot.slane %v748, 4
      %v754 = vshrl.u32 %v710, 16
      %v756 = vrot.slane %v754, 7
      %v757 = vshll.u32 %v710, 16
      %v759 = vor.u32 %v756, %v757
      %v760 = vrot.slane %v756, 4
      %v762 = vshrl.u32 %v711, 16
      %v764 = vrot.slane %v762, 7
      %v765 = vshll.u32 %v711, 16
      %v767 = vor.u32 %v764, %v765
      %v768 = vrot.slane %v764, 4
      %v770 = vshrl.u32 %v712, 16
      %v772 = vrot.slane %v770, 7
      %v773 = vshll.u32 %v712, 16
      %v775 = vor.u32 %v772, %v773
      %v776 = vrot.slane %v772, 4
      %s793 = scalar_lea.vmem [#allocation2], 8
      %vm794 = vcmask 60416
      %vm795 = vsmask.f32 7938
      %vm796 = vmand %vm794, %vm795
      %v797 = vld [vmem:[%s793] sm:$0xf]
      %v798 = vsel %vm796, %v719, %v797
      %799 = vst [vmem:[%s793] sm:$0xf] %v798
      %vm800 = vcmask 57344
      %vm801 = vsmask.f32 256
      %vm802 = vmand %vm800, %vm801
      %v803 = vld [vmem:[%s793 + $0x4] sm:$0x1]
      %v804 = vsel %vm802, %v720, %v803
      %805 = vst [vmem:[%s793 + $0x4] sm:$0x1] %v804
      %v806 = vld [vmem:[%s793 + $0x8] sm:$0xf]
      %v807 = vsel %vm796, %v727, %v806
      %808 = vst [vmem:[%s793 + $0x8] sm:$0xf] %v807
      %v809 = vld [vmem:[%s793 + $0xc] sm:$0x1]
      %v810 = vsel %vm802, %v728, %v809
      %811 = vst [vmem:[%s793 + $0xc] sm:$0x1] %v810
      %v812 = vld [vmem:[%s793 + $0x10] sm:$0xf]
      %v813 = vsel %vm796, %v735, %v812
      %814 = vst [vmem:[%s793 + $0x10] sm:$0xf] %v813
      %v815 = vld [vmem:[%s793 + $0x14] sm:$0x1]
      %v816 = vsel %vm802, %v736, %v815
      %817 = vst [vmem:[%s793 + $0x14] sm:$0x1] %v816
      %v818 = vld [vmem:[%s793 + $0x18] sm:$0xf]
      %v819 = vsel %vm796, %v743, %v818
      %820 = vst [vmem:[%s793 + $0x18] sm:$0xf] %v819
      %v821 = vld [vmem:[%s793 + $0x1c] sm:$0x1]
      %v822 = vsel %vm802, %v744, %v821
      %823 = vst [vmem:[%s793 + $0x1c] sm:$0x1] %v822
      %v824 = vld [vmem:[%s793 + $0x20] sm:$0xf]
      %v825 = vsel %vm796, %v751, %v824
      %826 = vst [vmem:[%s793 + $0x20] sm:$0xf] %v825
      %v827 = vld [vmem:[%s793 + $0x24] sm:$0x1]
      %v828 = vsel %vm802, %v752, %v827
      %829 = vst [vmem:[%s793 + $0x24] sm:$0x1] %v828
      %v830 = vld [vmem:[%s793 + $0x28] sm:$0xf]
      %v831 = vsel %vm796, %v759, %v830
      %832 = vst [vmem:[%s793 + $0x28] sm:$0xf] %v831
      %v833 = vld [vmem:[%s793 + $0x2c] sm:$0x1]
      %v834 = vsel %vm802, %v760, %v833
      %835 = vst [vmem:[%s793 + $0x2c] sm:$0x1] %v834
      %v836 = vld [vmem:[%s793 + $0x30] sm:$0xf]
      %v837 = vsel %vm796, %v767, %v836
      %838 = vst [vmem:[%s793 + $0x30] sm:$0xf] %v837
      %v839 = vld [vmem:[%s793 + $0x34] sm:$0x1]
      %v840 = vsel %vm802, %v768, %v839
      %841 = vst [vmem:[%s793 + $0x34] sm:$0x1] %v840
      %v842 = vld [vmem:[%s793 + $0x38] sm:$0xf]
      %v843 = vsel %vm796, %v775, %v842
      %844 = vst [vmem:[%s793 + $0x38] sm:$0xf] %v843
      %v845 = vld [vmem:[%s793 + $0x3c] sm:$0x1]
      %v846 = vsel %vm802, %v776, %v845
      %847 = vst [vmem:[%s793 + $0x3c] sm:$0x1] %v846
      %v848 = vld [vmem:[#allocation2] sm:$0xf]
      %v849 = vld [vmem:[#allocation2 + $0x8] sm:$0xf]
      %v850 = vld [vmem:[#allocation2 + $0x10] sm:$0xf]
      %v851 = vld [vmem:[#allocation2 + $0x18] sm:$0xf]
      %v852 = vld [vmem:[#allocation2 + $0x20] sm:$0xf]
      %v853 = vld [vmem:[#allocation2 + $0x28] sm:$0xf]
      %v854 = vld [vmem:[#allocation2 + $0x30] sm:$0xf]
      %v855 = vld [vmem:[#allocation2 + $0x38] sm:$0xf]
      %v856 = vld [vmem:[#allocation2 + $0x4] sm:$0x1]
      %v857 = vld [vmem:[#allocation2 + $0xc] sm:$0x1]
      %v858 = vld [vmem:[#allocation2 + $0x14] sm:$0x1]
      %v859 = vld [vmem:[#allocation2 + $0x1c] sm:$0x1]
      %v860 = vld [vmem:[#allocation2 + $0x24] sm:$0x1]
      %v861 = vld [vmem:[#allocation2 + $0x2c] sm:$0x1]
      %v862 = vld [vmem:[#allocation2 + $0x34] sm:$0x1]
      %v863 = vld [vmem:[#allocation2 + $0x3c] sm:$0x1]
      %v865 = vshrl.u32 %v848, 16
      %v867 = vrot.slane %v865, 4
      %v868 = vshll.u32 %v848, 16
      %v870 = vrot.slane %v868, 5
      %v871 = vor.u32 %v867, %v870
      %v872 = vrot.slane %v871, 4
      %v874 = vshll.u32 %v856, 16
      %v876 = vrot.slane %v874, 5
      %v877 = vsel %vm333, %v872, %v876
      %v879 = vshrl.u32 %v849, 16
      %v881 = vrot.slane %v879, 4
      %v882 = vshll.u32 %v849, 16
      %v884 = vrot.slane %v882, 5
      %v885 = vor.u32 %v881, %v884
      %v886 = vrot.slane %v885, 4
      %v888 = vshll.u32 %v857, 16
      %v890 = vrot.slane %v888, 5
      %v891 = vsel %vm333, %v886, %v890
      %v893 = vshrl.u32 %v850, 16
      %v895 = vrot.slane %v893, 4
      %v896 = vshll.u32 %v850, 16
      %v898 = vrot.slane %v896, 5
      %v899 = vor.u32 %v895, %v898
      %v900 = vrot.slane %v899, 4
      %v902 = vshll.u32 %v858, 16
      %v904 = vrot.slane %v902, 5
      %v905 = vsel %vm333, %v900, %v904
      %v907 = vshrl.u32 %v851, 16
      %v909 = vrot.slane %v907, 4
      %v910 = vshll.u32 %v851, 16
      %v912 = vrot.slane %v910, 5
      %v913 = vor.u32 %v909, %v912
      %v914 = vrot.slane %v913, 4
      %v916 = vshll.u32 %v859, 16
      %v918 = vrot.slane %v916, 5
      %v919 = vsel %vm333, %v914, %v918
      %v921 = vshrl.u32 %v852, 16
      %v923 = vrot.slane %v921, 4
      %v924 = vshll.u32 %v852, 16
      %v926 = vrot.slane %v924, 5
      %v927 = vor.u32 %v923, %v926
      %v928 = vrot.slane %v927, 4
      %v930 = vshll.u32 %v860, 16
      %v932 = vrot.slane %v930, 5
      %v933 = vsel %vm333, %v928, %v932
      %v935 = vshrl.u32 %v853, 16
      %v937 = vrot.slane %v935, 4
      %v938 = vshll.u32 %v853, 16
      %v940 = vrot.slane %v938, 5
      %v941 = vor.u32 %v937, %v940
      %v942 = vrot.slane %v941, 4
      %v944 = vshll.u32 %v861, 16
      %v946 = vrot.slane %v944, 5
      %v947 = vsel %vm333, %v942, %v946
      %v949 = vshrl.u32 %v854, 16
      %v951 = vrot.slane %v949, 4
      %v952 = vshll.u32 %v854, 16
      %v954 = vrot.slane %v952, 5
      %v955 = vor.u32 %v951, %v954
      %v956 = vrot.slane %v955, 4
      %v958 = vshll.u32 %v862, 16
      %v960 = vrot.slane %v958, 5
      %v961 = vsel %vm333, %v956, %v960
      %v963 = vshrl.u32 %v855, 16
      %v965 = vrot.slane %v963, 4
      %v966 = vshll.u32 %v855, 16
      %v968 = vrot.slane %v966, 5
      %v969 = vor.u32 %v965, %v968
      %v970 = vrot.slane %v969, 4
      %v972 = vshll.u32 %v863, 16
      %v974 = vrot.slane %v972, 5
      %v975 = vsel %vm333, %v970, %v974
      %v976 = vld [vmem:[%s793] sm:$0xf]
      %v977 = vld [vmem:[%s793 + $0x8] sm:$0xf]
      %v978 = vld [vmem:[%s793 + $0x10] sm:$0xf]
      %v979 = vld [vmem:[%s793 + $0x18] sm:$0xf]
      %v980 = vld [vmem:[%s793 + $0x20] sm:$0xf]
      %v981 = vld [vmem:[%s793 + $0x28] sm:$0xf]
      %v982 = vld [vmem:[%s793 + $0x30] sm:$0xf]
      %v983 = vld [vmem:[%s793 + $0x38] sm:$0xf]
      %v984 = vld [vmem:[%s793 + $0x4] sm:$0x1]
      %v985 = vld [vmem:[%s793 + $0xc] sm:$0x1]
      %v986 = vld [vmem:[%s793 + $0x14] sm:$0x1]
      %v987 = vld [vmem:[%s793 + $0x1c] sm:$0x1]
      %v988 = vld [vmem:[%s793 + $0x24] sm:$0x1]
      %v989 = vld [vmem:[%s793 + $0x2c] sm:$0x1]
      %v990 = vld [vmem:[%s793 + $0x34] sm:$0x1]
      %v991 = vld [vmem:[%s793 + $0x3c] sm:$0x1]
      %v993 = vshrl.u32 %v976, 16
      %v995 = vrot.slane %v993, 4
      %v996 = vshll.u32 %v976, 16
      %v998 = vrot.slane %v996, 5
      %v999 = vor.u32 %v995, %v998
      %v1000 = vrot.slane %v999, 4
      %v1002 = vshll.u32 %v984, 16
      %v1004 = vrot.slane %v1002, 5
      %v1005 = vsel %vm333, %v1000, %v1004
      %v1007 = vshrl.u32 %v977, 16
      %v1009 = vrot.slane %v1007, 4
      %v1010 = vshll.u32 %v977, 16
      %v1012 = vrot.slane %v1010, 5
      %v1013 = vor.u32 %v1009, %v1012
      %v1014 = vrot.slane %v1013, 4
      %v1016 = vshll.u32 %v985, 16
      %v1018 = vrot.slane %v1016, 5
      %v1019 = vsel %vm333, %v1014, %v1018
      %v1021 = vshrl.u32 %v978, 16
      %v1023 = vrot.slane %v1021, 4
      %v1024 = vshll.u32 %v978, 16
      %v1026 = vrot.slane %v1024, 5
      %v1027 = vor.u32 %v1023, %v1026
      %v1028 = vrot.slane %v1027, 4
      %v1030 = vshll.u32 %v986, 16
      %v1032 = vrot.slane %v1030, 5
      %v1033 = vsel %vm333, %v1028, %v1032
      %v1035 = vshrl.u32 %v979, 16
      %v1037 = vrot.slane %v1035, 4
      %v1038 = vshll.u32 %v979, 16
      %v1040 = vrot.slane %v1038, 5
      %v1041 = vor.u32 %v1037, %v1040
      %v1042 = vrot.slane %v1041, 4
      %v1044 = vshll.u32 %v987, 16
      %v1046 = vrot.slane %v1044, 5
      %v1047 = vsel %vm333, %v1042, %v1046
      %v1049 = vshrl.u32 %v980, 16
      %v1051 = vrot.slane %v1049, 4
      %v1052 = vshll.u32 %v980, 16
      %v1054 = vrot.slane %v1052, 5
      %v1055 = vor.u32 %v1051, %v1054
      %v1056 = vrot.slane %v1055, 4
      %v1058 = vshll.u32 %v988, 16
      %v1060 = vrot.slane %v1058, 5
      %v1061 = vsel %vm333, %v1056, %v1060
      %v1063 = vshrl.u32 %v981, 16
      %v1065 = vrot.slane %v1063, 4
      %v1066 = vshll.u32 %v981, 16
      %v1068 = vrot.slane %v1066, 5
      %v1069 = vor.u32 %v1065, %v1068
      %v1070 = vrot.slane %v1069, 4
      %v1072 = vshll.u32 %v989, 16
      %v1074 = vrot.slane %v1072, 5
      %v1075 = vsel %vm333, %v1070, %v1074
      %v1077 = vshrl.u32 %v982, 16
      %v1079 = vrot.slane %v1077, 4
      %v1080 = vshll.u32 %v982, 16
      %v1082 = vrot.slane %v1080, 5
      %v1083 = vor.u32 %v1079, %v1082
      %v1084 = vrot.slane %v1083, 4
      %v1086 = vshll.u32 %v990, 16
      %v1088 = vrot.slane %v1086, 5
      %v1089 = vsel %vm333, %v1084, %v1088
      %v1091 = vshrl.u32 %v983, 16
      %v1093 = vrot.slane %v1091, 4
      %v1094 = vshll.u32 %v983, 16
      %v1096 = vrot.slane %v1094, 5
      %v1097 = vor.u32 %v1093, %v1096
      %v1098 = vrot.slane %v1097, 4
      %v1100 = vshll.u32 %v991, 16
      %v1102 = vrot.slane %v1100, 5
      %v1103 = vsel %vm333, %v1098, %v1102
      %v1112 = vunpack.c.l.b16 %v848
      %v1113 = vunpack.c.l.b16 %v849
      %v1114 = vunpack.c.l.b16 %v850
      %v1115 = vunpack.c.l.b16 %v851
      %v1116 = vunpack.c.l.b16 %v852
      %v1117 = vunpack.c.l.b16 %v853
      %v1118 = vunpack.c.l.b16 %v854
      %v1119 = vunpack.c.l.b16 %v855
      %v1120 = vpack.c.b16 %v1113, %v1112
      %v1121 = vpack.c.b16 %v1115, %v1114
      %v1122 = vpack.c.b16 %v1117, %v1116
      %v1123 = vpack.c.b16 %v1119, %v1118
      %v1124 = vunpack.c.l.b16 %v877
      %v1125 = vunpack.c.l.b16 %v891
      %v1126 = vunpack.c.l.b16 %v905
      %v1127 = vunpack.c.l.b16 %v919
      %v1128 = vunpack.c.l.b16 %v933
      %v1129 = vunpack.c.l.b16 %v947
      %v1130 = vunpack.c.l.b16 %v961
      %v1131 = vunpack.c.l.b16 %v975
      %v1132 = vpack.c.b16 %v1125, %v1124
      %v1133 = vpack.c.b16 %v1127, %v1126
      %v1134 = vpack.c.b16 %v1129, %v1128
      %v1135 = vpack.c.b16 %v1131, %v1130
      %1136 = vrot.lane.b32.xlu0 %v1132, 8
      %v1137 = vpop.permute.xlu0 %1136
      %1138 = vrot.lane.b32.xlu0 %v1133, 8
      %v1139 = vpop.permute.xlu0 %1138
      %1140 = vrot.lane.b32.xlu0 %v1134, 8
      %v1141 = vpop.permute.xlu0 %1140
      %1142 = vrot.lane.b32.xlu0 %v1135, 8
      %v1143 = vpop.permute.xlu0 %1142
      %v1152 = vunpack.c.l.b16 %v976
      %v1153 = vunpack.c.l.b16 %v977
      %v1154 = vunpack.c.l.b16 %v978
      %v1155 = vunpack.c.l.b16 %v979
      %v1156 = vunpack.c.l.b16 %v980
      %v1157 = vunpack.c.l.b16 %v981
      %v1158 = vunpack.c.l.b16 %v982
      %v1159 = vunpack.c.l.b16 %v983
      %v1160 = vpack.c.b16 %v1153, %v1152
      %v1161 = vpack.c.b16 %v1155, %v1154
      %v1162 = vpack.c.b16 %v1157, %v1156
      %v1163 = vpack.c.b16 %v1159, %v1158
      %1164 = vrot.lane.b32.xlu0 %v1160, 16
      %v1165 = vpop.permute.xlu0 %1164
      %1166 = vrot.lane.b32.xlu0 %v1161, 16
      %v1167 = vpop.permute.xlu0 %1166
      %1168 = vrot.lane.b32.xlu0 %v1162, 16
      %v1169 = vpop.permute.xlu0 %1168
      %1170 = vrot.lane.b32.xlu0 %v1163, 16
      %v1171 = vpop.permute.xlu0 %1170
      %v1172 = vunpack.c.l.b16 %v1005
      %v1173 = vunpack.c.l.b16 %v1019
      %v1174 = vunpack.c.l.b16 %v1033
      %v1175 = vunpack.c.l.b16 %v1047
      %v1176 = vunpack.c.l.b16 %v1061
      %v1177 = vunpack.c.l.b16 %v1075
      %v1178 = vunpack.c.l.b16 %v1089
      %v1179 = vunpack.c.l.b16 %v1103
      %v1180 = vpack.c.b16 %v1173, %v1172
      %v1181 = vpack.c.b16 %v1175, %v1174
      %v1182 = vpack.c.b16 %v1177, %v1176
      %v1183 = vpack.c.b16 %v1179, %v1178
      %1184 = vrot.lane.b32.xlu0 %v1180, 24
      %v1185 = vpop.permute.xlu0 %1184
      %1186 = vrot.lane.b32.xlu0 %v1181, 24
      %v1187 = vpop.permute.xlu0 %1186
      %1188 = vrot.lane.b32.xlu0 %v1182, 24
      %v1189 = vpop.permute.xlu0 %1188
      %1190 = vrot.lane.b32.xlu0 %v1183, 24
      %v1191 = vpop.permute.xlu0 %1190
      %vm1192 = vcmask 64512
      %v1195 = vsel %vm1192, %v1120, %v1137
      %v1198 = vsel %vm1192, %v1121, %v1139
      %v1201 = vsel %vm1192, %v1122, %v1141
      %v1204 = vsel %vm1192, %v1123, %v1143
      %v1206 = vsel %vm514, %v1195, %v1165
      %v1208 = vsel %vm514, %v1198, %v1167
      %v1210 = vsel %vm514, %v1201, %v1169
      %v1212 = vsel %vm514, %v1204, %v1171
      %vm1213 = vcmask 195584
      %v1215 = vsel %vm1213, %v1206, %v1185
      %v1217 = vsel %vm1213, %v1208, %v1187
      %v1219 = vsel %vm1213, %v1210, %v1189
      %v1221 = vsel %vm1213, %v1212, %v1191
      %v1222 = vld [vmem:[%s2] sm:$0xf]
      %v1223 = vld [vmem:[%s2 + $0x4] sm:$0xf]
      %v1224 = vld [vmem:[%s2 + $0x8] sm:$0xf]
      %v1225 = vld [vmem:[%s2 + $0xc] sm:$0xf]
      %v1230 = vunpack.c.l.b16 %v1222
      %v1231 = vunpack.c.l.b16 %v1223
      %v1232 = vunpack.c.l.b16 %v1224
      %v1233 = vunpack.c.l.b16 %v1225
      %v1234 = vpack.c.b16 %v1231, %v1230
      %v1235 = vpack.c.b16 %v1233, %v1232
      %v1238 = vsel %vm527, %v1215, 0
      %v1240 = vsel %vm527, %v1217, 0
      %v1242 = vsel %vm527, %v1219, 0
      %v1244 = vsel %vm527, %v1221, 0
      %1246 = vmatprep.subr.bf16.mxu0 0
      %1247 = vmatpush1.bf16.msra.mxu0 0
      %1248 = vmatprep.subr.bf16.mxu0 0
      %1249 = vmatpush1.bf16.msra.mxu0 0
      %1250 = vmatprep.subr.bf16.mxu0 0
      %1251 = vmatpush1.bf16.msra.mxu0 0
      %1252 = vmatprep.subr.bf16.mxu0 0
      %1253 = vmatpush1.bf16.msra.mxu0 0
      %1254 = vmatprep.subr.bf16.mxu0 0
      %1255 = vmatpush1.bf16.msra.mxu0 0
      %1256 = vmatprep.subr.bf16.mxu0 0
      %1257 = vmatpush1.bf16.msra.mxu0 0
      %1258 = vmatprep.subr.bf16.mxu0 0
      %1259 = vmatpush1.bf16.msra.mxu0 %v1235
      %1260 = vmatprep.subr.bf16.mxu0 0
      %1261 = vmatpush1.bf16.msra.mxu0 %v1234
      %1262 = vmatprep.subr.bf16.mxu0 0
      %1263 = vmatpush2.bf16.msra.mxu0 0
      %1264 = vmatprep.subr.bf16.mxu0 0
      %1265 = vmatpush2.bf16.msra.mxu0 0
      %1266 = vmatprep.subr.bf16.mxu0 0
      %1267 = vmatpush2.bf16.msra.mxu0 0
      %1268 = vmatprep.subr.bf16.mxu0 0
      %1269 = vmatpush2.bf16.msra.mxu0 0
      %1270 = vmatprep.subr.bf16.mxu0 0
      %1271 = vmatpush2.bf16.msra.mxu0 0
      %1272 = vmatprep.subr.bf16.mxu0 0
      %1273 = vmatpush2.bf16.msra.mxu0 0
      %1274 = vmatprep.subr.bf16.mxu0 0
      %1275 = vmatpush2.bf16.msra.mxu0 0
      %1276 = vmatprep.subr.bf16.mxu0 0
      %1277 = vmatpush2.bf16.msra.mxu0 0
      %1278 = vmatprep.mubr.bf16.mxu0 0
      %1279 = vmatmul.mubr.bf16.gmra.mxu0 %v1238
      %v1280 = vpop.f32.mrf.mxu0
      %v1281 = vadd.f32 0.0, %v1280
      %v1282 = vpop.f32.mrf.mxu0
      %v1283 = vpop.f32.mrf.mxu0
      %v1284 = vadd.f32 0.0, %v1283
      %v1285 = vpop.f32.mrf.mxu0
      %1286 = vmatprep.mubr.bf16.mxu0 0
      %1287 = vmatmul.mubr.bf16.gmra.mxu0 %v1240
      %v1288 = vpop.f32.mrf.mxu0
      %v1289 = vadd.f32 0.0, %v1288
      %v1290 = vpop.f32.mrf.mxu0
      %v1291 = vpop.f32.mrf.mxu0
      %v1292 = vadd.f32 0.0, %v1291
      %v1293 = vpop.f32.mrf.mxu0
      %1294 = vmatprep.mubr.bf16.mxu0 0
      %1295 = vmatmul.mubr.bf16.gmra.mxu0 %v1242
      %v1296 = vpop.f32.mrf.mxu0
      %v1297 = vadd.f32 0.0, %v1296
      %v1298 = vpop.f32.mrf.mxu0
      %v1299 = vpop.f32.mrf.mxu0
      %v1300 = vadd.f32 0.0, %v1299
      %v1301 = vpop.f32.mrf.mxu0
      %1302 = vmatprep.mubr.bf16.mxu0 0
      %1303 = vmatmul.mubr.bf16.gmra.mxu0 %v1244
      %v1304 = vpop.f32.mrf.mxu0
      %v1305 = vadd.f32 0.0, %v1304
      %v1306 = vpop.f32.mrf.mxu0
      %v1307 = vpop.f32.mrf.mxu0
      %v1308 = vadd.f32 0.0, %v1307
      %v1309 = vpop.f32.mrf.mxu0
      %1310 = vdwg.mxu0
      %vm1311 = vcmask 31744
      %v1312 = vsel %vm1311, %v1281, 0.0
      %v1313 = vsel %vm1311, %v1284, 0.0
      %v1314 = vadd.f32 %v1312, %v1313
      %v1315 = vsel %vm1311, %v1289, 0.0
      %v1316 = vadd.f32 %v1314, %v1315
      %v1317 = vsel %vm1311, %v1292, 0.0
      %v1318 = vadd.f32 %v1316, %v1317
      %v1319 = vsel %vm1311, %v1297, 0.0
      %v1320 = vadd.f32 %v1318, %v1319
      %v1321 = vsel %vm1311, %v1300, 0.0
      %v1322 = vadd.f32 %v1320, %v1321
      %v1323 = vsel %vm1311, %v1305, 0.0
      %v1324 = vadd.f32 %v1322, %v1323
      %v1325 = vsel %vm1311, %v1308, 0.0
      %v1326 = vadd.f32 %v1324, %v1325
      %v1327 = vrot.slane %v1326, 4
      %v1328 = vadd.f32 %v1326, %v1327
      %v1329 = vrot.slane %v1328, 2
      %v1330 = vadd.f32 %v1328, %v1329
      %v1331 = vrot.slane %v1330, 1
      %v1332 = vadd.f32 %v1330, %v1331
      %v1333 = vadd.f32 %v1332, 0.0
      %v1334 = vmul.f32 %v1281, %v1281
      %v1335 = vmul.f32 %v1284, %v1284
      %v1336 = vmul.f32 %v1289, %v1289
      %v1337 = vmul.f32 %v1292, %v1292
      %v1338 = vmul.f32 %v1297, %v1297
      %v1339 = vmul.f32 %v1300, %v1300
      %v1340 = vmul.f32 %v1305, %v1305
      %v1341 = vmul.f32 %v1308, %v1308
      %v1342 = vsel %vm1311, %v1334, 0.0
      %v1343 = vsel %vm1311, %v1335, 0.0
      %v1344 = vadd.f32 %v1342, %v1343
      %v1345 = vsel %vm1311, %v1336, 0.0
      %v1346 = vadd.f32 %v1344, %v1345
      %v1347 = vsel %vm1311, %v1337, 0.0
      %v1348 = vadd.f32 %v1346, %v1347
      %v1349 = vsel %vm1311, %v1338, 0.0
      %v1350 = vadd.f32 %v1348, %v1349
      %v1351 = vsel %vm1311, %v1339, 0.0
      %v1352 = vadd.f32 %v1350, %v1351
      %v1353 = vsel %vm1311, %v1340, 0.0
      %v1354 = vadd.f32 %v1352, %v1353
      %v1355 = vsel %vm1311, %v1341, 0.0
      %v1356 = vadd.f32 %v1354, %v1355
      %v1357 = vrot.slane %v1356, 4
      %v1358 = vadd.f32 %v1356, %v1357
      %v1359 = vrot.slane %v1358, 2
      %v1360 = vadd.f32 %v1358, %v1359
      %v1361 = vrot.slane %v1360, 1
      %v1362 = vadd.f32 %v1360, %v1361
      %v1363 = vadd.f32 %v1362, 0.0
      %v1364 = vpack.c.bf16 %v1281, %v1281
      %v1365 = vpack.c.bf16 %v1284, %v1284
      %v1366 = vpack.c.bf16 %v1289, %v1289
      %v1367 = vpack.c.bf16 %v1292, %v1292
      %v1368 = vpack.c.bf16 %v1297, %v1297
      %v1369 = vpack.c.bf16 %v1300, %v1300
      %v1370 = vpack.c.bf16 %v1305, %v1305
      %v1371 = vpack.c.bf16 %v1308, %v1308
      %v1372 = vld [vmem:[#allocation2] sm:$0xe]
      %v1373 = vld [vmem:[#allocation2 + $0x8] sm:$0xe]
      %v1374 = vld [vmem:[#allocation2 + $0x10] sm:$0xe]
      %v1375 = vld [vmem:[#allocation2 + $0x18] sm:$0xe]
      %v1376 = vld [vmem:[#allocation2 + $0x20] sm:$0xe]
      %v1377 = vld [vmem:[#allocation2 + $0x28] sm:$0xe]
      %v1378 = vld [vmem:[#allocation2 + $0x30] sm:$0xe]
      %v1379 = vld [vmem:[#allocation2 + $0x38] sm:$0xe]
      %vm1396 = vcmask 1042432
      %vm1397 = vcmask 1046532
      %vm1398 = vmor %vm1396, %vm1397
      %v1399 = vrot.slane %v1372, 5
      %v1400 = vrot.slane %v1399, 4
      %v1401 = vrot.slane %v856, 5
      %v1402 = vsel %vm1398, %v1400, %v1401
      %v1403 = vrot.slane %v1373, 5
      %v1404 = vrot.slane %v1403, 4
      %v1405 = vrot.slane %v857, 5
      %v1406 = vsel %vm1398, %v1404, %v1405
      %v1407 = vrot.slane %v1374, 5
      %v1408 = vrot.slane %v1407, 4
      %v1409 = vrot.slane %v858, 5
      %v1410 = vsel %vm1398, %v1408, %v1409
      %v1411 = vrot.slane %v1375, 5
      %v1412 = vrot.slane %v1411, 4
      %v1413 = vrot.slane %v859, 5
      %v1414 = vsel %vm1398, %v1412, %v1413
      %v1415 = vrot.slane %v1376, 5
      %v1416 = vrot.slane %v1415, 4
      %v1417 = vrot.slane %v860, 5
      %v1418 = vsel %vm1398, %v1416, %v1417
      %v1419 = vrot.slane %v1377, 5
      %v1420 = vrot.slane %v1419, 4
      %v1421 = vrot.slane %v861, 5
      %v1422 = vsel %vm1398, %v1420, %v1421
      %v1423 = vrot.slane %v1378, 5
      %v1424 = vrot.slane %v1423, 4
      %v1425 = vrot.slane %v862, 5
      %v1426 = vsel %vm1398, %v1424, %v1425
      %v1427 = vrot.slane %v1379, 5
      %v1428 = vrot.slane %v1427, 4
      %v1429 = vrot.slane %v863, 5
      %v1430 = vsel %vm1398, %v1428, %v1429
      %v1431 = vld [vmem:[%s793] sm:$0xe]
      %v1432 = vld [vmem:[%s793 + $0x8] sm:$0xe]
      %v1433 = vld [vmem:[%s793 + $0x10] sm:$0xe]
      %v1434 = vld [vmem:[%s793 + $0x18] sm:$0xe]
      %v1435 = vld [vmem:[%s793 + $0x20] sm:$0xe]
      %v1436 = vld [vmem:[%s793 + $0x28] sm:$0xe]
      %v1437 = vld [vmem:[%s793 + $0x30] sm:$0xe]
      %v1438 = vld [vmem:[%s793 + $0x38] sm:$0xe]
      %v1455 = vrot.slane %v1431, 5
      %v1456 = vrot.slane %v1455, 4
      %v1457 = vrot.slane %v984, 5
      %v1458 = vsel %vm1398, %v1456, %v1457
      %v1459 = vrot.slane %v1432, 5
      %v1460 = vrot.slane %v1459, 4
      %v1461 = vrot.slane %v985, 5
      %v1462 = vsel %vm1398, %v1460, %v1461
      %v1463 = vrot.slane %v1433, 5
      %v1464 = vrot.slane %v1463, 4
      %v1465 = vrot.slane %v986, 5
      %v1466 = vsel %vm1398, %v1464, %v1465
      %v1467 = vrot.slane %v1434, 5
      %v1468 = vrot.slane %v1467, 4
      %v1469 = vrot.slane %v987, 5
      %v1470 = vsel %vm1398, %v1468, %v1469
      %v1471 = vrot.slane %v1435, 5
      %v1472 = vrot.slane %v1471, 4
      %v1473 = vrot.slane %v988, 5
      %v1474 = vsel %vm1398, %v1472, %v1473
      %v1475 = vrot.slane %v1436, 5
      %v1476 = vrot.slane %v1475, 4
      %v1477 = vrot.slane %v989, 5
      %v1478 = vsel %vm1398, %v1476, %v1477
      %v1479 = vrot.slane %v1437, 5
      %v1480 = vrot.slane %v1479, 4
      %v1481 = vrot.slane %v990, 5
      %v1482 = vsel %vm1398, %v1480, %v1481
      %v1483 = vrot.slane %v1438, 5
      %v1484 = vrot.slane %v1483, 4
      %v1485 = vrot.slane %v991, 5
      %v1486 = vsel %vm1398, %v1484, %v1485
      %v1487 = vunpack.c.l.b16 %v1402
      %v1488 = vunpack.c.l.b16 %v1406
      %v1489 = vunpack.c.l.b16 %v1410
      %v1490 = vunpack.c.l.b16 %v1414
      %v1491 = vunpack.c.l.b16 %v1418
      %v1492 = vunpack.c.l.b16 %v1422
      %v1493 = vunpack.c.l.b16 %v1426
      %v1494 = vunpack.c.l.b16 %v1430
      %v1495 = vpack.c.b16 %v1488, %v1487
      %v1496 = vpack.c.b16 %v1490, %v1489
      %v1497 = vpack.c.b16 %v1492, %v1491
      %v1498 = vpack.c.b16 %v1494, %v1493
      %1499 = vrot.lane.b32.xlu0 %v1495, 8
      %v1500 = vpop.permute.xlu0 %1499
      %1501 = vrot.lane.b32.xlu0 %v1496, 8
      %v1502 = vpop.permute.xlu0 %1501
      %1503 = vrot.lane.b32.xlu0 %v1497, 8
      %v1504 = vpop.permute.xlu0 %1503
      %1505 = vrot.lane.b32.xlu0 %v1498, 8
      %v1506 = vpop.permute.xlu0 %1505
      %1507 = vrot.lane.b32.xlu0 %v1180, 16
      %v1508 = vpop.permute.xlu0 %1507
      %1509 = vrot.lane.b32.xlu0 %v1181, 16
      %v1510 = vpop.permute.xlu0 %1509
      %1511 = vrot.lane.b32.xlu0 %v1182, 16
      %v1512 = vpop.permute.xlu0 %1511
      %1513 = vrot.lane.b32.xlu0 %v1183, 16
      %v1514 = vpop.permute.xlu0 %1513
      %v1515 = vunpack.c.l.b16 %v1458
      %v1516 = vunpack.c.l.b16 %v1462
      %v1517 = vunpack.c.l.b16 %v1466
      %v1518 = vunpack.c.l.b16 %v1470
      %v1519 = vunpack.c.l.b16 %v1474
      %v1520 = vunpack.c.l.b16 %v1478
      %v1521 = vunpack.c.l.b16 %v1482
      %v1522 = vunpack.c.l.b16 %v1486
      %v1523 = vpack.c.b16 %v1516, %v1515
      %v1524 = vpack.c.b16 %v1518, %v1517
      %v1525 = vpack.c.b16 %v1520, %v1519
      %v1526 = vpack.c.b16 %v1522, %v1521
      %1527 = vrot.lane.b32.xlu0 %v1523, 24
      %v1528 = vpop.permute.xlu0 %1527
      %1529 = vrot.lane.b32.xlu0 %v1524, 24
      %v1530 = vpop.permute.xlu0 %1529
      %1531 = vrot.lane.b32.xlu0 %v1525, 24
      %v1532 = vpop.permute.xlu0 %1531
      %1533 = vrot.lane.b32.xlu0 %v1526, 24
      %v1534 = vpop.permute.xlu0 %1533
      %v1537 = vsel %vm1192, %v1132, %v1500
      %v1540 = vsel %vm1192, %v1133, %v1502
      %v1543 = vsel %vm1192, %v1134, %v1504
      %v1546 = vsel %vm1192, %v1135, %v1506
      %v1548 = vsel %vm514, %v1537, %v1508
      %v1550 = vsel %vm514, %v1540, %v1510
      %v1552 = vsel %vm514, %v1543, %v1512
      %v1554 = vsel %vm514, %v1546, %v1514
      %v1556 = vsel %vm1213, %v1548, %v1528
      %v1558 = vsel %vm1213, %v1550, %v1530
      %v1560 = vsel %vm1213, %v1552, %v1532
      %v1562 = vsel %vm1213, %v1554, %v1534
      %s1563 = scalar_lea.vmem %s2, 16
      %v1564 = vld [vmem:[%s1563] sm:$0xf]
      %v1565 = vld [vmem:[%s1563 + $0x4] sm:$0xf]
      %v1566 = vld [vmem:[%s1563 + $0x8] sm:$0xf]
      %v1567 = vld [vmem:[%s1563 + $0xc] sm:$0xf]
      %v1572 = vunpack.c.l.b16 %v1564
      %v1573 = vunpack.c.l.b16 %v1565
      %v1574 = vunpack.c.l.b16 %v1566
      %v1575 = vunpack.c.l.b16 %v1567
      %v1576 = vpack.c.b16 %v1573, %v1572
      %v1577 = vpack.c.b16 %v1575, %v1574
      %v1580 = vsel %vm527, %v1556, 0
      %v1582 = vsel %vm527, %v1558, 0
      %v1584 = vsel %vm527, %v1560, 0
      %v1586 = vsel %vm527, %v1562, 0
      %1588 = vmatprep.subr.bf16.mxu0 0
      %1589 = vmatpush1.bf16.msra.mxu0 0
      %1590 = vmatprep.subr.bf16.mxu0 0
      %1591 = vmatpush1.bf16.msra.mxu0 0
      %1592 = vmatprep.subr.bf16.mxu0 0
      %1593 = vmatpush1.bf16.msra.mxu0 0
      %1594 = vmatprep.subr.bf16.mxu0 0
      %1595 = vmatpush1.bf16.msra.mxu0 0
      %1596 = vmatprep.subr.bf16.mxu0 0
      %1597 = vmatpush1.bf16.msra.mxu0 0
      %1598 = vmatprep.subr.bf16.mxu0 0
      %1599 = vmatpush1.bf16.msra.mxu0 0
      %1600 = vmatprep.subr.bf16.mxu0 0
      %1601 = vmatpush1.bf16.msra.mxu0 %v1577
      %1602 = vmatprep.subr.bf16.mxu0 0
      %1603 = vmatpush1.bf16.msra.mxu0 %v1576
      %1604 = vmatprep.subr.bf16.mxu0 0
      %1605 = vmatpush2.bf16.msra.mxu0 0
      %1606 = vmatprep.subr.bf16.mxu0 0
      %1607 = vmatpush2.bf16.msra.mxu0 0
      %1608 = vmatprep.subr.bf16.mxu0 0
      %1609 = vmatpush2.bf16.msra.mxu0 0
      %1610 = vmatprep.subr.bf16.mxu0 0
      %1611 = vmatpush2.bf16.msra.mxu0 0
      %1612 = vmatprep.subr.bf16.mxu0 0
      %1613 = vmatpush2.bf16.msra.mxu0 0
      %1614 = vmatprep.subr.bf16.mxu0 0
      %1615 = vmatpush2.bf16.msra.mxu0 0
      %1616 = vmatprep.subr.bf16.mxu0 0
      %1617 = vmatpush2.bf16.msra.mxu0 0
      %1618 = vmatprep.subr.bf16.mxu0 0
      %1619 = vmatpush2.bf16.msra.mxu0 0
      %1620 = vmatprep.mubr.bf16.mxu0 0
      %1621 = vmatmul.mubr.bf16.gmra.mxu0 %v1580
      %v1622 = vpop.f32.mrf.mxu0
      %v1623 = vadd.f32 0.0, %v1622
      %v1624 = vpop.f32.mrf.mxu0
      %v1625 = vpop.f32.mrf.mxu0
      %v1626 = vadd.f32 0.0, %v1625
      %v1627 = vpop.f32.mrf.mxu0
      %1628 = vmatprep.mubr.bf16.mxu0 0
      %1629 = vmatmul.mubr.bf16.gmra.mxu0 %v1582
      %v1630 = vpop.f32.mrf.mxu0
      %v1631 = vadd.f32 0.0, %v1630
      %v1632 = vpop.f32.mrf.mxu0
      %v1633 = vpop.f32.mrf.mxu0
      %v1634 = vadd.f32 0.0, %v1633
      %v1635 = vpop.f32.mrf.mxu0
      %1636 = vmatprep.mubr.bf16.mxu0 0
      %1637 = vmatmul.mubr.bf16.gmra.mxu0 %v1584
      %v1638 = vpop.f32.mrf.mxu0
      %v1639 = vadd.f32 0.0, %v1638
      %v1640 = vpop.f32.mrf.mxu0
      %v1641 = vpop.f32.mrf.mxu0
      %v1642 = vadd.f32 0.0, %v1641
      %v1643 = vpop.f32.mrf.mxu0
      %1644 = vmatprep.mubr.bf16.mxu0 0
      %1645 = vmatmul.mubr.bf16.gmra.mxu0 %v1586
      %v1646 = vpop.f32.mrf.mxu0
      %v1647 = vadd.f32 0.0, %v1646
      %v1648 = vpop.f32.mrf.mxu0
      %v1649 = vpop.f32.mrf.mxu0
      %v1650 = vadd.f32 0.0, %v1649
      %v1651 = vpop.f32.mrf.mxu0
      %1652 = vdwg.mxu0
      %v1653 = vsel %vm1311, %v1623, 0.0
      %v1654 = vsel %vm1311, %v1626, 0.0
      %v1655 = vadd.f32 %v1653, %v1654
      %v1656 = vsel %vm1311, %v1631, 0.0
      %v1657 = vadd.f32 %v1655, %v1656
      %v1658 = vsel %vm1311, %v1634, 0.0
      %v1659 = vadd.f32 %v1657, %v1658
      %v1660 = vsel %vm1311, %v1639, 0.0
      %v1661 = vadd.f32 %v1659, %v1660
      %v1662 = vsel %vm1311, %v1642, 0.0
      %v1663 = vadd.f32 %v1661, %v1662
      %v1664 = vsel %vm1311, %v1647, 0.0
      %v1665 = vadd.f32 %v1663, %v1664
      %v1666 = vsel %vm1311, %v1650, 0.0
      %v1667 = vadd.f32 %v1665, %v1666
      %v1668 = vrot.slane %v1667, 4
      %v1669 = vadd.f32 %v1667, %v1668
      %v1670 = vrot.slane %v1669, 2
      %v1671 = vadd.f32 %v1669, %v1670
      %v1672 = vrot.slane %v1671, 1
      %v1673 = vadd.f32 %v1671, %v1672
      %v1674 = vadd.f32 %v1333, %v1673
      %v1675 = vmul.f32 %v1623, %v1623
      %v1676 = vmul.f32 %v1626, %v1626
      %v1677 = vmul.f32 %v1631, %v1631
      %v1678 = vmul.f32 %v1634, %v1634
      %v1679 = vmul.f32 %v1639, %v1639
      %v1680 = vmul.f32 %v1642, %v1642
      %v1681 = vmul.f32 %v1647, %v1647
      %v1682 = vmul.f32 %v1650, %v1650
      %v1683 = vsel %vm1311, %v1675, 0.0
      %v1684 = vsel %vm1311, %v1676, 0.0
      %v1685 = vadd.f32 %v1683, %v1684
      %v1686 = vsel %vm1311, %v1677, 0.0
      %v1687 = vadd.f32 %v1685, %v1686
      %v1688 = vsel %vm1311, %v1678, 0.0
      %v1689 = vadd.f32 %v1687, %v1688
      %v1690 = vsel %vm1311, %v1679, 0.0
      %v1691 = vadd.f32 %v1689, %v1690
      %v1692 = vsel %vm1311, %v1680, 0.0
      %v1693 = vadd.f32 %v1691, %v1692
      %v1694 = vsel %vm1311, %v1681, 0.0
      %v1695 = vadd.f32 %v1693, %v1694
      %v1696 = vsel %vm1311, %v1682, 0.0
      %v1697 = vadd.f32 %v1695, %v1696
      %v1698 = vrot.slane %v1697, 4
      %v1699 = vadd.f32 %v1697, %v1698
      %v1700 = vrot.slane %v1699, 2
      %v1701 = vadd.f32 %v1699, %v1700
      %v1702 = vrot.slane %v1701, 1
      %v1703 = vadd.f32 %v1701, %v1702
      %v1704 = vadd.f32 %v1363, %v1703
      %v1705 = vpack.c.bf16 %v1623, %v1623
      %v1706 = vpack.c.bf16 %v1626, %v1626
      %v1707 = vpack.c.bf16 %v1631, %v1631
      %v1708 = vpack.c.bf16 %v1634, %v1634
      %v1709 = vpack.c.bf16 %v1639, %v1639
      %v1710 = vpack.c.bf16 %v1642, %v1642
      %v1711 = vpack.c.bf16 %v1647, %v1647
      %v1712 = vpack.c.bf16 %v1650, %v1650
      %s1713 = scalar_lea.vmem [#allocation2], 16
      %v1714 = vld [vmem:[%s1713] sm:$0xf]
      %v1715 = vld [vmem:[%s1713 + $0x8] sm:$0xf]
      %v1716 = vld [vmem:[%s1713 + $0x10] sm:$0xf]
      %v1717 = vld [vmem:[%s1713 + $0x18] sm:$0xf]
      %v1718 = vld [vmem:[%s1713 + $0x20] sm:$0xf]
      %v1719 = vld [vmem:[%s1713 + $0x28] sm:$0xf]
      %v1720 = vld [vmem:[%s1713 + $0x30] sm:$0xf]
      %v1721 = vld [vmem:[%s1713 + $0x38] sm:$0xf]
      %v1722 = vld [vmem:[%s1713 + $0x4] sm:$0x1]
      %v1723 = vld [vmem:[%s1713 + $0xc] sm:$0x1]
      %v1724 = vld [vmem:[%s1713 + $0x14] sm:$0x1]
      %v1725 = vld [vmem:[%s1713 + $0x1c] sm:$0x1]
      %v1726 = vld [vmem:[%s1713 + $0x24] sm:$0x1]
      %v1727 = vld [vmem:[%s1713 + $0x2c] sm:$0x1]
      %v1728 = vld [vmem:[%s1713 + $0x34] sm:$0x1]
      %v1729 = vld [vmem:[%s1713 + $0x3c] sm:$0x1]
      %v1731 = vshrl.u32 %v1714, 16
      %v1733 = vrot.slane %v1731, 4
      %v1734 = vshll.u32 %v1714, 16
      %v1736 = vrot.slane %v1734, 5
      %v1737 = vor.u32 %v1733, %v1736
      %v1738 = vrot.slane %v1737, 4
      %v1740 = vshll.u32 %v1722, 16
      %v1742 = vrot.slane %v1740, 5
      %v1743 = vsel %vm333, %v1738, %v1742
      %v1745 = vshrl.u32 %v1715, 16
      %v1747 = vrot.slane %v1745, 4
      %v1748 = vshll.u32 %v1715, 16
      %v1750 = vrot.slane %v1748, 5
      %v1751 = vor.u32 %v1747, %v1750
      %v1752 = vrot.slane %v1751, 4
      %v1754 = vshll.u32 %v1723, 16
      %v1756 = vrot.slane %v1754, 5
      %v1757 = vsel %vm333, %v1752, %v1756
      %v1759 = vshrl.u32 %v1716, 16
      %v1761 = vrot.slane %v1759, 4
      %v1762 = vshll.u32 %v1716, 16
      %v1764 = vrot.slane %v1762, 5
      %v1765 = vor.u32 %v1761, %v1764
      %v1766 = vrot.slane %v1765, 4
      %v1768 = vshll.u32 %v1724, 16
      %v1770 = vrot.slane %v1768, 5
      %v1771 = vsel %vm333, %v1766, %v1770
      %v1773 = vshrl.u32 %v1717, 16
      %v1775 = vrot.slane %v1773, 4
      %v1776 = vshll.u32 %v1717, 16
      %v1778 = vrot.slane %v1776, 5
      %v1779 = vor.u32 %v1775, %v1778
      %v1780 = vrot.slane %v1779, 4
      %v1782 = vshll.u32 %v1725, 16
      %v1784 = vrot.slane %v1782, 5
      %v1785 = vsel %vm333, %v1780, %v1784
      %v1787 = vshrl.u32 %v1718, 16
      %v1789 = vrot.slane %v1787, 4
      %v1790 = vshll.u32 %v1718, 16
      %v1792 = vrot.slane %v1790, 5
      %v1793 = vor.u32 %v1789, %v1792
      %v1794 = vrot.slane %v1793, 4
      %v1796 = vshll.u32 %v1726, 16
      %v1798 = vrot.slane %v1796, 5
      %v1799 = vsel %vm333, %v1794, %v1798
      %v1801 = vshrl.u32 %v1719, 16
      %v1803 = vrot.slane %v1801, 4
      %v1804 = vshll.u32 %v1719, 16
      %v1806 = vrot.slane %v1804, 5
      %v1807 = vor.u32 %v1803, %v1806
      %v1808 = vrot.slane %v1807, 4
      %v1810 = vshll.u32 %v1727, 16
      %v1812 = vrot.slane %v1810, 5
      %v1813 = vsel %vm333, %v1808, %v1812
      %v1815 = vshrl.u32 %v1720, 16
      %v1817 = vrot.slane %v1815, 4
      %v1818 = vshll.u32 %v1720, 16
      %v1820 = vrot.slane %v1818, 5
      %v1821 = vor.u32 %v1817, %v1820
      %v1822 = vrot.slane %v1821, 4
      %v1824 = vshll.u32 %v1728, 16
      %v1826 = vrot.slane %v1824, 5
      %v1827 = vsel %vm333, %v1822, %v1826
      %v1829 = vshrl.u32 %v1721, 16
      %v1831 = vrot.slane %v1829, 4
      %v1832 = vshll.u32 %v1721, 16
      %v1834 = vrot.slane %v1832, 5
      %v1835 = vor.u32 %v1831, %v1834
      %v1836 = vrot.slane %v1835, 4
      %v1838 = vshll.u32 %v1729, 16
      %v1840 = vrot.slane %v1838, 5
      %v1841 = vsel %vm333, %v1836, %v1840
      %1842 = vrot.lane.b32.xlu0 %v1180, 8
      %v1843 = vpop.permute.xlu0 %1842
      %1844 = vrot.lane.b32.xlu0 %v1181, 8
      %v1845 = vpop.permute.xlu0 %1844
      %1846 = vrot.lane.b32.xlu0 %v1182, 8
      %v1847 = vpop.permute.xlu0 %1846
      %1848 = vrot.lane.b32.xlu0 %v1183, 8
      %v1849 = vpop.permute.xlu0 %1848
      %v1858 = vunpack.c.l.b16 %v1714
      %v1859 = vunpack.c.l.b16 %v1715
      %v1860 = vunpack.c.l.b16 %v1716
      %v1861 = vunpack.c.l.b16 %v1717
      %v1862 = vunpack.c.l.b16 %v1718
      %v1863 = vunpack.c.l.b16 %v1719
      %v1864 = vunpack.c.l.b16 %v1720
      %v1865 = vunpack.c.l.b16 %v1721
      %v1866 = vpack.c.b16 %v1859, %v1858
      %v1867 = vpack.c.b16 %v1861, %v1860
      %v1868 = vpack.c.b16 %v1863, %v1862
      %v1869 = vpack.c.b16 %v1865, %v1864
      %1870 = vrot.lane.b32.xlu0 %v1866, 16
      %v1871 = vpop.permute.xlu0 %1870
      %1872 = vrot.lane.b32.xlu0 %v1867, 16
      %v1873 = vpop.permute.xlu0 %1872
      %1874 = vrot.lane.b32.xlu0 %v1868, 16
      %v1875 = vpop.permute.xlu0 %1874
      %1876 = vrot.lane.b32.xlu0 %v1869, 16
      %v1877 = vpop.permute.xlu0 %1876
      %v1878 = vunpack.c.l.b16 %v1743
      %v1879 = vunpack.c.l.b16 %v1757
      %v1880 = vunpack.c.l.b16 %v1771
      %v1881 = vunpack.c.l.b16 %v1785
      %v1882 = vunpack.c.l.b16 %v1799
      %v1883 = vunpack.c.l.b16 %v1813
      %v1884 = vunpack.c.l.b16 %v1827
      %v1885 = vunpack.c.l.b16 %v1841
      %v1886 = vpack.c.b16 %v1879, %v1878
      %v1887 = vpack.c.b16 %v1881, %v1880
      %v1888 = vpack.c.b16 %v1883, %v1882
      %v1889 = vpack.c.b16 %v1885, %v1884
      %1890 = vrot.lane.b32.xlu0 %v1886, 24
      %v1891 = vpop.permute.xlu0 %1890
      %1892 = vrot.lane.b32.xlu0 %v1887, 24
      %v1893 = vpop.permute.xlu0 %1892
      %1894 = vrot.lane.b32.xlu0 %v1888, 24
      %v1895 = vpop.permute.xlu0 %1894
      %1896 = vrot.lane.b32.xlu0 %v1889, 24
      %v1897 = vpop.permute.xlu0 %1896
      %v1900 = vsel %vm1192, %v1160, %v1843
      %v1903 = vsel %vm1192, %v1161, %v1845
      %v1906 = vsel %vm1192, %v1162, %v1847
      %v1909 = vsel %vm1192, %v1163, %v1849
      %v1911 = vsel %vm514, %v1900, %v1871
      %v1913 = vsel %vm514, %v1903, %v1873
      %v1915 = vsel %vm514, %v1906, %v1875
      %v1917 = vsel %vm514, %v1909, %v1877
      %v1919 = vsel %vm1213, %v1911, %v1891
      %v1921 = vsel %vm1213, %v1913, %v1893
      %v1923 = vsel %vm1213, %v1915, %v1895
      %v1925 = vsel %vm1213, %v1917, %v1897
      %s1926 = scalar_lea.vmem %s2, 32
      %v1927 = vld [vmem:[%s1926] sm:$0xf]
      %v1928 = vld [vmem:[%s1926 + $0x4] sm:$0xf]
      %v1929 = vld [vmem:[%s1926 + $0x8] sm:$0xf]
      %v1930 = vld [vmem:[%s1926 + $0xc] sm:$0xf]
      %v1935 = vunpack.c.l.b16 %v1927
      %v1936 = vunpack.c.l.b16 %v1928
      %v1937 = vunpack.c.l.b16 %v1929
      %v1938 = vunpack.c.l.b16 %v1930
      %v1939 = vpack.c.b16 %v1936, %v1935
      %v1940 = vpack.c.b16 %v1938, %v1937
      %v1943 = vsel %vm527, %v1919, 0
      %v1945 = vsel %vm527, %v1921, 0
      %v1947 = vsel %vm527, %v1923, 0
      %v1949 = vsel %vm527, %v1925, 0
      %1951 = vmatprep.subr.bf16.mxu0 0
      %1952 = vmatpush1.bf16.msra.mxu0 0
      %1953 = vmatprep.subr.bf16.mxu0 0
      %1954 = vmatpush1.bf16.msra.mxu0 0
      %1955 = vmatprep.subr.bf16.mxu0 0
      %1956 = vmatpush1.bf16.msra.mxu0 0
      %1957 = vmatprep.subr.bf16.mxu0 0
      %1958 = vmatpush1.bf16.msra.mxu0 0
      %1959 = vmatprep.subr.bf16.mxu0 0
      %1960 = vmatpush1.bf16.msra.mxu0 0
      %1961 = vmatprep.subr.bf16.mxu0 0
      %1962 = vmatpush1.bf16.msra.mxu0 0
      %1963 = vmatprep.subr.bf16.mxu0 0
      %1964 = vmatpush1.bf16.msra.mxu0 %v1940
      %1965 = vmatprep.subr.bf16.mxu0 0
      %1966 = vmatpush1.bf16.msra.mxu0 %v1939
      %1967 = vmatprep.subr.bf16.mxu0 0
      %1968 = vmatpush2.bf16.msra.mxu0 0
      %1969 = vmatprep.subr.bf16.mxu0 0
      %1970 = vmatpush2.bf16.msra.mxu0 0
      %1971 = vmatprep.subr.bf16.mxu0 0
      %1972 = vmatpush2.bf16.msra.mxu0 0
      %1973 = vmatprep.subr.bf16.mxu0 0
      %1974 = vmatpush2.bf16.msra.mxu0 0
      %1975 = vmatprep.subr.bf16.mxu0 0
      %1976 = vmatpush2.bf16.msra.mxu0 0
      %1977 = vmatprep.subr.bf16.mxu0 0
      %1978 = vmatpush2.bf16.msra.mxu0 0
      %1979 = vmatprep.subr.bf16.mxu0 0
      %1980 = vmatpush2.bf16.msra.mxu0 0
      %1981 = vmatprep.subr.bf16.mxu0 0
      %1982 = vmatpush2.bf16.msra.mxu0 0
      %1983 = vmatprep.mubr.bf16.mxu0 0
      %1984 = vmatmul.mubr.bf16.gmra.mxu0 %v1943
      %v1985 = vpop.f32.mrf.mxu0
      %v1986 = vadd.f32 0.0, %v1985
      %v1987 = vpop.f32.mrf.mxu0
      %v1988 = vpop.f32.mrf.mxu0
      %v1989 = vadd.f32 0.0, %v1988
      %v1990 = vpop.f32.mrf.mxu0
      %1991 = vmatprep.mubr.bf16.mxu0 0
      %1992 = vmatmul.mubr.bf16.gmra.mxu0 %v1945
      %v1993 = vpop.f32.mrf.mxu0
      %v1994 = vadd.f32 0.0, %v1993
      %v1995 = vpop.f32.mrf.mxu0
      %v1996 = vpop.f32.mrf.mxu0
      %v1997 = vadd.f32 0.0, %v1996
      %v1998 = vpop.f32.mrf.mxu0
      %1999 = vmatprep.mubr.bf16.mxu0 0
      %2000 = vmatmul.mubr.bf16.gmra.mxu0 %v1947
      %v2001 = vpop.f32.mrf.mxu0
      %v2002 = vadd.f32 0.0, %v2001
      %v2003 = vpop.f32.mrf.mxu0
      %v2004 = vpop.f32.mrf.mxu0
      %v2005 = vadd.f32 0.0, %v2004
      %v2006 = vpop.f32.mrf.mxu0
      %2007 = vmatprep.mubr.bf16.mxu0 0
      %2008 = vmatmul.mubr.bf16.gmra.mxu0 %v1949
      %v2009 = vpop.f32.mrf.mxu0
      %v2010 = vadd.f32 0.0, %v2009
      %v2011 = vpop.f32.mrf.mxu0
      %v2012 = vpop.f32.mrf.mxu0
      %v2013 = vadd.f32 0.0, %v2012
      %v2014 = vpop.f32.mrf.mxu0
      %2015 = vdwg.mxu0
      %v2016 = vsel %vm1311, %v1986, 0.0
      %v2017 = vsel %vm1311, %v1989, 0.0
      %v2018 = vadd.f32 %v2016, %v2017
      %v2019 = vsel %vm1311, %v1994, 0.0
      %v2020 = vadd.f32 %v2018, %v2019
      %v2021 = vsel %vm1311, %v1997, 0.0
      %v2022 = vadd.f32 %v2020, %v2021
      %v2023 = vsel %vm1311, %v2002, 0.0
      %v2024 = vadd.f32 %v2022, %v2023
      %v2025 = vsel %vm1311, %v2005, 0.0
      %v2026 = vadd.f32 %v2024, %v2025
      %v2027 = vsel %vm1311, %v2010, 0.0
      %v2028 = vadd.f32 %v2026, %v2027
      %v2029 = vsel %vm1311, %v2013, 0.0
      %v2030 = vadd.f32 %v2028, %v2029
      %v2031 = vrot.slane %v2030, 4
      %v2032 = vadd.f32 %v2030, %v2031
      %v2033 = vrot.slane %v2032, 2
      %v2034 = vadd.f32 %v2032, %v2033
      %v2035 = vrot.slane %v2034, 1
      %v2036 = vadd.f32 %v2034, %v2035
      %v2037 = vadd.f32 %v1674, %v2036
      %v2038 = vmul.f32 %v1986, %v1986
      %v2039 = vmul.f32 %v1989, %v1989
      %v2040 = vmul.f32 %v1994, %v1994
      %v2041 = vmul.f32 %v1997, %v1997
      %v2042 = vmul.f32 %v2002, %v2002
      %v2043 = vmul.f32 %v2005, %v2005
      %v2044 = vmul.f32 %v2010, %v2010
      %v2045 = vmul.f32 %v2013, %v2013
      %v2046 = vsel %vm1311, %v2038, 0.0
      %v2047 = vsel %vm1311, %v2039, 0.0
      %v2048 = vadd.f32 %v2046, %v2047
      %v2049 = vsel %vm1311, %v2040, 0.0
      %v2050 = vadd.f32 %v2048, %v2049
      %v2051 = vsel %vm1311, %v2041, 0.0
      %v2052 = vadd.f32 %v2050, %v2051
      %v2053 = vsel %vm1311, %v2042, 0.0
      %v2054 = vadd.f32 %v2052, %v2053
      %v2055 = vsel %vm1311, %v2043, 0.0
      %v2056 = vadd.f32 %v2054, %v2055
      %v2057 = vsel %vm1311, %v2044, 0.0
      %v2058 = vadd.f32 %v2056, %v2057
      %v2059 = vsel %vm1311, %v2045, 0.0
      %v2060 = vadd.f32 %v2058, %v2059
      %v2061 = vrot.slane %v2060, 4
      %v2062 = vadd.f32 %v2060, %v2061
      %v2063 = vrot.slane %v2062, 2
      %v2064 = vadd.f32 %v2062, %v2063
      %v2065 = vrot.slane %v2064, 1
      %v2066 = vadd.f32 %v2064, %v2065
      %v2067 = vadd.f32 %v1704, %v2066
      %v2068 = vpack.c.bf16 %v1986, %v1986
      %v2069 = vpack.c.bf16 %v1989, %v1989
      %v2070 = vpack.c.bf16 %v1994, %v1994
      %v2071 = vpack.c.bf16 %v1997, %v1997
      %v2072 = vpack.c.bf16 %v2002, %v2002
      %v2073 = vpack.c.bf16 %v2005, %v2005
      %v2074 = vpack.c.bf16 %v2010, %v2010
      %v2075 = vpack.c.bf16 %v2013, %v2013
      %v2076 = vld [vmem:[%s1713] sm:$0xe]
      %v2077 = vld [vmem:[%s1713 + $0x8] sm:$0xe]
      %v2078 = vld [vmem:[%s1713 + $0x10] sm:$0xe]
      %v2079 = vld [vmem:[%s1713 + $0x18] sm:$0xe]
      %v2080 = vld [vmem:[%s1713 + $0x20] sm:$0xe]
      %v2081 = vld [vmem:[%s1713 + $0x28] sm:$0xe]
      %v2082 = vld [vmem:[%s1713 + $0x30] sm:$0xe]
      %v2083 = vld [vmem:[%s1713 + $0x38] sm:$0xe]
      %v2100 = vrot.slane %v2076, 5
      %v2101 = vrot.slane %v2100, 4
      %v2102 = vrot.slane %v1722, 5
      %v2103 = vsel %vm1398, %v2101, %v2102
      %v2104 = vrot.slane %v2077, 5
      %v2105 = vrot.slane %v2104, 4
      %v2106 = vrot.slane %v1723, 5
      %v2107 = vsel %vm1398, %v2105, %v2106
      %v2108 = vrot.slane %v2078, 5
      %v2109 = vrot.slane %v2108, 4
      %v2110 = vrot.slane %v1724, 5
      %v2111 = vsel %vm1398, %v2109, %v2110
      %v2112 = vrot.slane %v2079, 5
      %v2113 = vrot.slane %v2112, 4
      %v2114 = vrot.slane %v1725, 5
      %v2115 = vsel %vm1398, %v2113, %v2114
      %v2116 = vrot.slane %v2080, 5
      %v2117 = vrot.slane %v2116, 4
      %v2118 = vrot.slane %v1726, 5
      %v2119 = vsel %vm1398, %v2117, %v2118
      %v2120 = vrot.slane %v2081, 5
      %v2121 = vrot.slane %v2120, 4
      %v2122 = vrot.slane %v1727, 5
      %v2123 = vsel %vm1398, %v2121, %v2122
      %v2124 = vrot.slane %v2082, 5
      %v2125 = vrot.slane %v2124, 4
      %v2126 = vrot.slane %v1728, 5
      %v2127 = vsel %vm1398, %v2125, %v2126
      %v2128 = vrot.slane %v2083, 5
      %v2129 = vrot.slane %v2128, 4
      %v2130 = vrot.slane %v1729, 5
      %v2131 = vsel %vm1398, %v2129, %v2130
      %2132 = vrot.lane.b32.xlu0 %v1523, 8
      %v2133 = vpop.permute.xlu0 %2132
      %2134 = vrot.lane.b32.xlu0 %v1524, 8
      %v2135 = vpop.permute.xlu0 %2134
      %2136 = vrot.lane.b32.xlu0 %v1525, 8
      %v2137 = vpop.permute.xlu0 %2136
      %2138 = vrot.lane.b32.xlu0 %v1526, 8
      %v2139 = vpop.permute.xlu0 %2138
      %2140 = vrot.lane.b32.xlu0 %v1886, 16
      %v2141 = vpop.permute.xlu0 %2140
      %2142 = vrot.lane.b32.xlu0 %v1887, 16
      %v2143 = vpop.permute.xlu0 %2142
      %2144 = vrot.lane.b32.xlu0 %v1888, 16
      %v2145 = vpop.permute.xlu0 %2144
      %2146 = vrot.lane.b32.xlu0 %v1889, 16
      %v2147 = vpop.permute.xlu0 %2146
      %v2148 = vunpack.c.l.b16 %v2103
      %v2149 = vunpack.c.l.b16 %v2107
      %v2150 = vunpack.c.l.b16 %v2111
      %v2151 = vunpack.c.l.b16 %v2115
      %v2152 = vunpack.c.l.b16 %v2119
      %v2153 = vunpack.c.l.b16 %v2123
      %v2154 = vunpack.c.l.b16 %v2127
      %v2155 = vunpack.c.l.b16 %v2131
      %v2156 = vpack.c.b16 %v2149, %v2148
      %v2157 = vpack.c.b16 %v2151, %v2150
      %v2158 = vpack.c.b16 %v2153, %v2152
      %v2159 = vpack.c.b16 %v2155, %v2154
      %2160 = vrot.lane.b32.xlu0 %v2156, 24
      %v2161 = vpop.permute.xlu0 %2160
      %2162 = vrot.lane.b32.xlu0 %v2157, 24
      %v2163 = vpop.permute.xlu0 %2162
      %2164 = vrot.lane.b32.xlu0 %v2158, 24
      %v2165 = vpop.permute.xlu0 %2164
      %2166 = vrot.lane.b32.xlu0 %v2159, 24
      %v2167 = vpop.permute.xlu0 %2166
      %v2170 = vsel %vm1192, %v1180, %v2133
      %v2173 = vsel %vm1192, %v1181, %v2135
      %v2176 = vsel %vm1192, %v1182, %v2137
      %v2179 = vsel %vm1192, %v1183, %v2139
      %v2181 = vsel %vm514, %v2170, %v2141
      %v2183 = vsel %vm514, %v2173, %v2143
      %v2185 = vsel %vm514, %v2176, %v2145
      %v2187 = vsel %vm514, %v2179, %v2147
      %v2189 = vsel %vm1213, %v2181, %v2161
      %v2191 = vsel %vm1213, %v2183, %v2163
      %v2193 = vsel %vm1213, %v2185, %v2165
      %v2195 = vsel %vm1213, %v2187, %v2167
      %s2196 = scalar_lea.vmem %s2, 48
      %v2197 = vld [vmem:[%s2196] sm:$0xf]
      %v2198 = vld [vmem:[%s2196 + $0x4] sm:$0xf]
      %v2199 = vld [vmem:[%s2196 + $0x8] sm:$0xf]
      %v2200 = vld [vmem:[%s2196 + $0xc] sm:$0xf]
      %v2205 = vunpack.c.l.b16 %v2197
      %v2206 = vunpack.c.l.b16 %v2198
      %v2207 = vunpack.c.l.b16 %v2199
      %v2208 = vunpack.c.l.b16 %v2200
      %v2209 = vpack.c.b16 %v2206, %v2205
      %v2210 = vpack.c.b16 %v2208, %v2207
      %v2213 = vsel %vm527, %v2189, 0
      %v2215 = vsel %vm527, %v2191, 0
      %v2217 = vsel %vm527, %v2193, 0
      %v2219 = vsel %vm527, %v2195, 0
      %2221 = vmatprep.subr.bf16.mxu0 0
      %2222 = vmatpush1.bf16.msra.mxu0 0
      %2223 = vmatprep.subr.bf16.mxu0 0
      %2224 = vmatpush1.bf16.msra.mxu0 0
      %2225 = vmatprep.subr.bf16.mxu0 0
      %2226 = vmatpush1.bf16.msra.mxu0 0
      %2227 = vmatprep.subr.bf16.mxu0 0
      %2228 = vmatpush1.bf16.msra.mxu0 0
      %2229 = vmatprep.subr.bf16.mxu0 0
      %2230 = vmatpush1.bf16.msra.mxu0 0
      %2231 = vmatprep.subr.bf16.mxu0 0
      %2232 = vmatpush1.bf16.msra.mxu0 0
      %2233 = vmatprep.subr.bf16.mxu0 0
      %2234 = vmatpush1.bf16.msra.mxu0 %v2210
      %2235 = vmatprep.subr.bf16.mxu0 0
      %2236 = vmatpush1.bf16.msra.mxu0 %v2209
      %2237 = vmatprep.subr.bf16.mxu0 0
      %2238 = vmatpush2.bf16.msra.mxu0 0
      %2239 = vmatprep.subr.bf16.mxu0 0
      %2240 = vmatpush2.bf16.msra.mxu0 0
      %2241 = vmatprep.subr.bf16.mxu0 0
      %2242 = vmatpush2.bf16.msra.mxu0 0
      %2243 = vmatprep.subr.bf16.mxu0 0
      %2244 = vmatpush2.bf16.msra.mxu0 0
      %2245 = vmatprep.subr.bf16.mxu0 0
      %2246 = vmatpush2.bf16.msra.mxu0 0
      %2247 = vmatprep.subr.bf16.mxu0 0
      %2248 = vmatpush2.bf16.msra.mxu0 0
      %2249 = vmatprep.subr.bf16.mxu0 0
      %2250 = vmatpush2.bf16.msra.mxu0 0
      %2251 = vmatprep.subr.bf16.mxu0 0
      %2252 = vmatpush2.bf16.msra.mxu0 0
      %2253 = vmatprep.mubr.bf16.mxu0 0
      %2254 = vmatmul.mubr.bf16.gmra.mxu0 %v2213
      %v2255 = vpop.f32.mrf.mxu0
      %v2256 = vadd.f32 0.0, %v2255
      %v2257 = vpop.f32.mrf.mxu0
      %v2258 = vpop.f32.mrf.mxu0
      %v2259 = vadd.f32 0.0, %v2258
      %v2260 = vpop.f32.mrf.mxu0
      %2261 = vmatprep.mubr.bf16.mxu0 0
      %2262 = vmatmul.mubr.bf16.gmra.mxu0 %v2215
      %v2263 = vpop.f32.mrf.mxu0
      %v2264 = vadd.f32 0.0, %v2263
      %v2265 = vpop.f32.mrf.mxu0
      %v2266 = vpop.f32.mrf.mxu0
      %v2267 = vadd.f32 0.0, %v2266
      %v2268 = vpop.f32.mrf.mxu0
      %2269 = vmatprep.mubr.bf16.mxu0 0
      %2270 = vmatmul.mubr.bf16.gmra.mxu0 %v2217
      %v2271 = vpop.f32.mrf.mxu0
      %v2272 = vadd.f32 0.0, %v2271
      %v2273 = vpop.f32.mrf.mxu0
      %v2274 = vpop.f32.mrf.mxu0
      %v2275 = vadd.f32 0.0, %v2274
      %v2276 = vpop.f32.mrf.mxu0
      %2277 = vmatprep.mubr.bf16.mxu0 0
      %2278 = vmatmul.mubr.bf16.gmra.mxu0 %v2219
      %v2279 = vpop.f32.mrf.mxu0
      %v2280 = vadd.f32 0.0, %v2279
      %v2281 = vpop.f32.mrf.mxu0
      %v2282 = vpop.f32.mrf.mxu0
      %v2283 = vadd.f32 0.0, %v2282
      %v2284 = vpop.f32.mrf.mxu0
      %2285 = vdwg.mxu0
      %v2286 = vsel %vm1311, %v2256, 0.0
      %v2287 = vsel %vm1311, %v2259, 0.0
      %v2288 = vadd.f32 %v2286, %v2287
      %v2289 = vsel %vm1311, %v2264, 0.0
      %v2290 = vadd.f32 %v2288, %v2289
      %v2291 = vsel %vm1311, %v2267, 0.0
      %v2292 = vadd.f32 %v2290, %v2291
      %v2293 = vsel %vm1311, %v2272, 0.0
      %v2294 = vadd.f32 %v2292, %v2293
      %v2295 = vsel %vm1311, %v2275, 0.0
      %v2296 = vadd.f32 %v2294, %v2295
      %v2297 = vsel %vm1311, %v2280, 0.0
      %v2298 = vadd.f32 %v2296, %v2297
      %v2299 = vsel %vm1311, %v2283, 0.0
      %v2300 = vadd.f32 %v2298, %v2299
      %v2301 = vrot.slane %v2300, 4
      %v2302 = vadd.f32 %v2300, %v2301
      %v2303 = vrot.slane %v2302, 2
      %v2304 = vadd.f32 %v2302, %v2303
      %v2305 = vrot.slane %v2304, 1
      %v2306 = vadd.f32 %v2304, %v2305
      %v2307 = vadd.f32 %v2037, %v2306
      %v2308 = vmul.f32 %v2256, %v2256
      %v2309 = vmul.f32 %v2259, %v2259
      %v2310 = vmul.f32 %v2264, %v2264
      %v2311 = vmul.f32 %v2267, %v2267
      %v2312 = vmul.f32 %v2272, %v2272
      %v2313 = vmul.f32 %v2275, %v2275
      %v2314 = vmul.f32 %v2280, %v2280
      %v2315 = vmul.f32 %v2283, %v2283
      %v2316 = vsel %vm1311, %v2308, 0.0
      %v2317 = vsel %vm1311, %v2309, 0.0
      %v2318 = vadd.f32 %v2316, %v2317
      %v2319 = vsel %vm1311, %v2310, 0.0
      %v2320 = vadd.f32 %v2318, %v2319
      %v2321 = vsel %vm1311, %v2311, 0.0
      %v2322 = vadd.f32 %v2320, %v2321
      %v2323 = vsel %vm1311, %v2312, 0.0
      %v2324 = vadd.f32 %v2322, %v2323
      %v2325 = vsel %vm1311, %v2313, 0.0
      %v2326 = vadd.f32 %v2324, %v2325
      %v2327 = vsel %vm1311, %v2314, 0.0
      %v2328 = vadd.f32 %v2326, %v2327
      %v2329 = vsel %vm1311, %v2315, 0.0
      %v2330 = vadd.f32 %v2328, %v2329
      %v2331 = vrot.slane %v2330, 4
      %v2332 = vadd.f32 %v2330, %v2331
      %v2333 = vrot.slane %v2332, 2
      %v2334 = vadd.f32 %v2332, %v2333
      %v2335 = vrot.slane %v2334, 1
      %v2336 = vadd.f32 %v2334, %v2335
      %v2337 = vadd.f32 %v2067, %v2336
      %v2338 = vpack.c.bf16 %v2256, %v2256
      %v2339 = vpack.c.bf16 %v2259, %v2259
      %v2340 = vpack.c.bf16 %v2264, %v2264
      %v2341 = vpack.c.bf16 %v2267, %v2267
      %v2342 = vpack.c.bf16 %v2272, %v2272
      %v2343 = vpack.c.bf16 %v2275, %v2275
      %v2344 = vpack.c.bf16 %v2280, %v2280
      %v2345 = vpack.c.bf16 %v2283, %v2283
      %2354 = vrot.lane.b32.xlu0 %v1705, 4
      %v2355 = vpop.permute.xlu0 %2354
      %2356 = vrot.lane.b32.xlu0 %v1706, 4
      %v2357 = vpop.permute.xlu0 %2356
      %2358 = vrot.lane.b32.xlu0 %v1707, 4
      %v2359 = vpop.permute.xlu0 %2358
      %2360 = vrot.lane.b32.xlu0 %v1708, 4
      %v2361 = vpop.permute.xlu0 %2360
      %2362 = vrot.lane.b32.xlu0 %v1709, 4
      %v2363 = vpop.permute.xlu0 %2362
      %2364 = vrot.lane.b32.xlu0 %v1710, 4
      %v2365 = vpop.permute.xlu0 %2364
      %2366 = vrot.lane.b32.xlu0 %v1711, 4
      %v2367 = vpop.permute.xlu0 %2366
      %2368 = vrot.lane.b32.xlu0 %v1712, 4
      %v2369 = vpop.permute.xlu0 %2368
      %2378 = vrot.lane.b32.xlu0 %v2068, 8
      %v2379 = vpop.permute.xlu0 %2378
      %2380 = vrot.lane.b32.xlu0 %v2069, 8
      %v2381 = vpop.permute.xlu0 %2380
      %2382 = vrot.lane.b32.xlu0 %v2070, 8
      %v2383 = vpop.permute.xlu0 %2382
      %2384 = vrot.lane.b32.xlu0 %v2071, 8
      %v2385 = vpop.permute.xlu0 %2384
      %2386 = vrot.lane.b32.xlu0 %v2072, 8
      %v2387 = vpop.permute.xlu0 %2386
      %2388 = vrot.lane.b32.xlu0 %v2073, 8
      %v2389 = vpop.permute.xlu0 %2388
      %2390 = vrot.lane.b32.xlu0 %v2074, 8
      %v2391 = vpop.permute.xlu0 %2390
      %2392 = vrot.lane.b32.xlu0 %v2075, 8
      %v2393 = vpop.permute.xlu0 %2392
      %2402 = vrot.lane.b32.xlu0 %v2338, 12
      %v2403 = vpop.permute.xlu0 %2402
      %2404 = vrot.lane.b32.xlu0 %v2339, 12
      %v2405 = vpop.permute.xlu0 %2404
      %2406 = vrot.lane.b32.xlu0 %v2340, 12
      %v2407 = vpop.permute.xlu0 %2406
      %2408 = vrot.lane.b32.xlu0 %v2341, 12
      %v2409 = vpop.permute.xlu0 %2408
      %2410 = vrot.lane.b32.xlu0 %v2342, 12
      %v2411 = vpop.permute.xlu0 %2410
      %2412 = vrot.lane.b32.xlu0 %v2343, 12
      %v2413 = vpop.permute.xlu0 %2412
      %2414 = vrot.lane.b32.xlu0 %v2344, 12
      %v2415 = vpop.permute.xlu0 %2414
      %2416 = vrot.lane.b32.xlu0 %v2345, 12
      %v2417 = vpop.permute.xlu0 %2416
      %v2420 = vsel %vm1311, %v1364, %v2355
      %v2423 = vsel %vm1311, %v1365, %v2357
      %v2426 = vsel %vm1311, %v1366, %v2359
      %v2429 = vsel %vm1311, %v1367, %v2361
      %v2432 = vsel %vm1311, %v1368, %v2363
      %v2435 = vsel %vm1311, %v1369, %v2365
      %v2438 = vsel %vm1311, %v1370, %v2367
      %v2441 = vsel %vm1311, %v1371, %v2369
      %v2443 = vsel %vm1192, %v2420, %v2379
      %v2445 = vsel %vm1192, %v2423, %v2381
      %v2447 = vsel %vm1192, %v2426, %v2383
      %v2449 = vsel %vm1192, %v2429, %v2385
      %v2451 = vsel %vm1192, %v2432, %v2387
      %v2453 = vsel %vm1192, %v2435, %v2389
      %v2455 = vsel %vm1192, %v2438, %v2391
      %v2457 = vsel %vm1192, %v2441, %v2393
      %vm2458 = vcmask 97280
      %v2460 = vsel %vm2458, %v2443, %v2403
      %v2463 = vsel %vm2458, %v2445, %v2405
      %v2466 = vsel %vm2458, %v2447, %v2407
      %v2469 = vsel %vm2458, %v2449, %v2409
      %v2472 = vsel %vm2458, %v2451, %v2411
      %v2475 = vsel %vm2458, %v2453, %v2413
      %v2478 = vsel %vm2458, %v2455, %v2415
      %v2481 = vsel %vm2458, %v2457, %v2417
      %vm2483 = vcmask 125952
      %2484 = vst.msk [vmem:[%s204] sm:$0xf] %vm2483, %v2460
      %2485 = vst.msk [vmem:[%s204 + $0x4] sm:$0xf] %vm2483, %v2463
      %2486 = vst.msk [vmem:[%s204 + $0x8] sm:$0xf] %vm2483, %v2466
      %2487 = vst.msk [vmem:[%s204 + $0xc] sm:$0xf] %vm2483, %v2469
      %2488 = vst.msk [vmem:[%s204 + $0x10] sm:$0xf] %vm2483, %v2472
      %2489 = vst.msk [vmem:[%s204 + $0x14] sm:$0xf] %vm2483, %v2475
      %2490 = vst.msk [vmem:[%s204 + $0x18] sm:$0xf] %vm2483, %v2478
      %2491 = vst.msk [vmem:[%s204 + $0x1c] sm:$0xf] %vm2483, %v2481
      %vm2492 = vcmask 1040384
      %v2493 = vsel %vm2492, %v2307, %v2337
      %vm2494 = vcmask 25600
      %2495 = vst.msk [vmem:[%s208] sm:$0x3] %vm2494, %v2493
      %p2496 = scmp.lt.s32.totalorder %s16, 1
      %s2497 = scalar_select %p2496, %s16, 1
      %s2498 = smul.addr %s2497, 8
      %s2499 = smul.addr %s2498, 4
      %s2500 = scalar_lea.vmem %s3, %s2499
      %p2501 = scmp.lt.s32.totalorder %s16, 1
      %s2502 = scalar_select %p2501, %s16, 1
      %s2503 = smul.addr %s2502, 2
      %s2504 = scalar_lea.vmem %s4, %s2503
      // Predicated region
      $region33: #{unet_block_innermost.1} parent=31 // pred_check
        %p2505 = pneg %p102
      $region34: #{unet_block_innermost.1} parent=31 // pred_check_branch
        %2507 = sbr.rel (%p2505) target = $region36
      $region35: #{unet_block_innermost.1} parent=31 // pred_region
        _
      $region36: #{unet_block_innermost.1} parent=31 // pred_fallthru
        _
      // Predicated region
      $region37: #{unet_block_innermost.1} parent=31 // pred_check
        %p2508 = pneg %p128
      $region38: #{unet_block_innermost.1} parent=31 // pred_check_branch
        %2510 = sbr.rel (%p2508) target = $region40
      $region39: #{unet_block_innermost.1} parent=31 // pred_region
        _
      $region40: #{unet_block_innermost.1} parent=31 // pred_fallthru
        _
    $region32: #{unet_block_innermost.1} parent=5 // pred_fallthru
      _
    %p2511 = scmp.le.s32.totalorder 2, %s11
    // Predicated region
    $region41: #{unet_block_innermost.1} parent=5 // pred_check
      %p2512 = pneg %p2511
    $region42: #{unet_block_innermost.1} parent=5 // pred_check_branch
      %2514 = sbr.rel (%p2512) target = $region44
    $region43: #{unet_block_innermost.1} parent=5 // pred_region
      %s2515 = ssub.s32 %s11, 2
      // Predicated region
      $region45: #{unet_block_innermost.1} parent=43 // pred_check
        %p2516 = pneg %p108
      $region46: #{unet_block_innermost.1} parent=43 // pred_check_branch
        %2518 = sbr.rel (%p2516) target = $region48
      $region47: #{unet_block_innermost.1} parent=43 // pred_region
        %p2519 = scmp.lt.s32.totalorder %s17, 1
        %s2520 = scalar_select %p2519, %s17, 1
        %s2521 = smul.addr %s2520, 8
        %s2522 = smul.addr %s2521, 4
        %s2523 = scalar_lea.vmem %s3, %s2522
      $region48: #{unet_block_innermost.1} parent=43 // pred_fallthru
        _
      // Predicated region
      $region49: #{unet_block_innermost.1} parent=43 // pred_check
        %p2524 = pneg %p134
      $region50: #{unet_block_innermost.1} parent=43 // pred_check_branch
        %2526 = sbr.rel (%p2524) target = $region52
      $region51: #{unet_block_innermost.1} parent=43 // pred_region
        %p2527 = scmp.lt.s32.totalorder %s17, 1
        %s2528 = scalar_select %p2527, %s17, 1
        %s2529 = smul.addr %s2528, 2
        %s2530 = scalar_lea.vmem %s4, %s2529
      $region52: #{unet_block_innermost.1} parent=43 // pred_fallthru
        _
    $region44: #{unet_block_innermost.1} parent=5 // pred_fallthru
      _
  $region6: #{unet_block_innermost.1} parent=0 // loop_footer
    %s15 = sadd.s32 1, %s11
  $region7: #{unet_block_innermost.1} parent=0 // loop_footer_branch
    %10 = sbr.rel target = $region3
  $region8: #{unet_block_innermost.1} parent=0 // loop_exit
    _

</llo_original>
